<compile_context>
chip_gen: v7x
topology: tpu7x:2x2x1
jax: 0.10.0
libtpu: 0.0.40
codegen_flags: <defaults>
</compile_context>

<pallas_src>
import functools
import math

import numpy as np

import jax
import jax.numpy as jnp
from jax.experimental import pallas as pl
from jax.experimental.pallas import tpu as pltpu

BN_EPS = 1e-5


# ---------------------------------------------------------------------------
# Per-generation knobs (conservative fallback if the device kind is unknown).
# ---------------------------------------------------------------------------
def _tpu_kind():
    try:
        return jax.devices()[0].device_kind.lower()
    except Exception:
        return ""


_KIND = _tpu_kind()
if "v6" in _KIND:                       # 128 MiB VMEM, 256-wide MXU
    VMEM_LIMIT = 96 * 1024 * 1024
    _TM_CAND = (1024, 512, 256, 128, 64)
    _TN_CAND = (512, 256, 128)
elif "v5" in _KIND:                     # 128 MiB VMEM, 128-wide MXU -> tn=128
    VMEM_LIMIT = 96 * 1024 * 1024
    _TM_CAND = (1024, 512, 256, 128, 64)
    _TN_CAND = (128, 256)
else:                                   # v7x (64 MiB physical) / unknown
    VMEM_LIMIT = 32 * 1024 * 1024
    _TM_CAND = (512, 256, 128, 64)
    _TN_CAND = (256, 128)


def _m_tile(m):
    # Prefer >=2 M tiles so both TensorCores (v7x) get work.
    for t in _TM_CAND:
        if m % t == 0 and m // t >= 2:
            return t
    for t in _TM_CAND:
        if m % t == 0:
            return t
    return m                # full-extent block (always legal)


def _n_tile(n):
    for t in _TN_CAND:
        if n % t == 0:
            return t
    return n                # full-extent block


def _row_tile(ho):
    for t in (32, 16, 8):
        if ho % t == 0 and ho // t >= 2:
            return t
    return ho


# ---------------------------------------------------------------------------
# Pallas kernels
# ---------------------------------------------------------------------------
def _mm_bias_kernel(a_ref, b_ref, c_ref, *rest, relu, has_res):
    """(TM,K)x(K,TN) matmul; BN scale pre-folded into B, epilogue = +bias
    (+bf16 residual) (+ReLU)."""
    if has_res:
        r_ref, o_ref = rest
    else:
        (o_ref,) = rest
    y = jnp.dot(a_ref[...], b_ref[...], preferred_element_type=jnp.float32)
    y = y + c_ref[...]
    if has_res:
        y = y + r_ref[...].astype(jnp.float32)   # residual added BEFORE relu
    if relu:
        y = jnp.maximum(y, 0.0)
    o_ref[...] = y.astype(o_ref.dtype)


def _conv3x3_kernel(*refs, n_planes, tap_specs, row_tile, extra_rows, wo, relu):
    """3x3 conv for one (image, row-tile, Cout-tile) grid step.

    refs = (*plane_refs, w_ref, c_ref, o_ref)
      plane_refs[p]: (1, pH, pW, Cin) bf16 padded image (or parity plane)
      w_ref:         (9*Cin, TCO) bf16   -- BN scale folded in, taps i-major
      c_ref:         (1, TCO) f32        -- folded BN bias
      o_ref:         (1, row_tile, wo, TCO)

    The 9 tap windows are concatenated along channels into ONE (row_tile*wo,
    9*Cin) LHS so a single deep-K MXU contraction replaces 9 shallow dots.
    """
    plane_refs = refs[:n_planes]
    w_ref, c_ref, o_ref = refs[n_planes:]
    tco = o_ref.shape[-1]

    r0 = pl.multiple_of(pl.program_id(1) * row_tile, row_tile)
    # One dynamic row-chunk read per VMEM-resident plane.
    chunks = [pr[0, pl.ds(r0, row_tile + extra_rows)] for pr in plane_refs]

    wins = [chunks[pidx][oi:oi + row_tile, oj:oj + wo, :]
            for (pidx, oi, oj) in tap_specs]
    lhs = jnp.concatenate(wins, axis=-1)               # (row_tile, wo, 9*Cin)
    lhs = lhs.reshape(row_tile * wo, lhs.shape[-1])    # reshape once

    y = jnp.dot(lhs, w_ref[...], preferred_element_type=jnp.float32)
    y = y + c_ref[...]
    if relu:
        y = jnp.maximum(y, 0.0)
    o_ref[...] = y.reshape(1, row_tile, wo, tco).astype(o_ref.dtype)


# ---------------------------------------------------------------------------
# Wrappers
# ---------------------------------------------------------------------------
def _matmul_bias_act(a, b, bias, *, relu, res=None, out_dtype=jnp.float32):
    """act(a @ b + bias [+ res]); a:(M,K) bf16, b:(K,N) bf16 (scale folded),
    res:(M,N) bf16.  K un-blocked: every output tile written exactly once."""
    m, k = a.shape
    _, n = b.shape
    tm, tn = _m_tile(m), _n_tile(n)

    c2 = bias.reshape(1, n).astype(jnp.float32)

    in_specs = [
        pl.BlockSpec((tm, k), lambda i, j: (i, 0)),
        pl.BlockSpec((k, tn), lambda i, j: (0, j)),
        pl.BlockSpec((1, tn), lambda i, j: (0, j)),
    ]
    args = [a, b, c2]

    out_itemsize = np.dtype(out_dtype).itemsize
    bytes_accessed = (a.size * a.dtype.itemsize + b.size * b.dtype.itemsize
                      + n * 4 + m * n * out_itemsize)

    has_res = res is not None
    if has_res:
        in_specs.append(pl.BlockSpec((tm, tn), lambda i, j: (i, j)))
        args.append(res)
        bytes_accessed += res.size * res.dtype.itemsize

    kernel = functools.partial(_mm_bias_kernel, relu=relu, has_res=has_res)
    return pl.pallas_call(
        kernel,
        out_shape=jax.ShapeDtypeStruct((m, n), out_dtype),
        grid=(m // tm, n // tn),
        in_specs=in_specs,
        out_specs=pl.BlockSpec((tm, tn), lambda i, j: (i, j)),
        compiler_params=pltpu.CompilerParams(
            dimension_semantics=("parallel", "parallel"),
            vmem_limit_bytes=VMEM_LIMIT),
        cost_estimate=pl.CostEstimate(
            flops=int(2 * m * n * k), transcendentals=0,
            bytes_accessed=int(bytes_accessed)),
    )(*args)


def conv1x1_bn_act(x, p, *, stride=1, relu=True, residual=None,
                   out_dtype=jnp.float32):
    """1x1 conv + folded BN (+bf16 residual) (+ReLU). x: NHWC."""
    if stride != 1:
        x = x[:, ::stride, ::stride, :]
    n, h, w, cin = x.shape
    cout = p["w"].shape[0]
    a = x.reshape(n * h * w, cin).astype(jnp.bfloat16)
    # Fold BN scale into the weights at trace time: OIHW -> (Cin, Cout)*scale.
    wmat = p["w"].reshape(cout, cin).T * p["scale"][None, :]
    b = wmat.astype(jnp.bfloat16)
    res2 = None
    if residual is not None:
        res2 = residual.reshape(n * h * w, cout).astype(jnp.bfloat16)
    y = _matmul_bias_act(a, b, p["bias"], relu=relu, res=res2,
                         out_dtype=out_dtype)
    return y.reshape(n, h, w, cout)


def conv3x3_bn_act(x, p, *, stride=1, relu=True, out_dtype=jnp.float32):
    """3x3 conv (padding=1) + folded BN (+ReLU). x: NHWC. stride in {1, 2}."""
    n, h, w, cin = x.shape
    cout = p["w"].shape[0]
    ho = (h + 2 - 3) // stride + 1
    wo = (w + 2 - 3) // stride + 1

    # TODO(synk): the pad / parity split are wrapper-side XLA passes over the
    # (small) conv1 activation; they could be fused into conv1's out_spec.
    xp = jnp.pad(x, ((0, 0), (1, 1), (1, 1), (0, 0))).astype(jnp.bfloat16)
    if stride == 1:
        planes = [xp]
        tap_specs = tuple((0, i, j) for i in range(3) for j in range(3))
        extra_rows = 2
    elif stride == 2:
        # Parity (space-to-depth) split so every tap window is a contiguous,
        # unit-stride slice of a VMEM-resident plane.
        planes = [xp[:, a::2, b::2, :] for a in range(2) for b in range(2)]
        tap_specs = tuple((2 * (i % 2) + (j % 2), i // 2, j // 2)
                          for i in range(3) for j in range(3))
        extra_rows = 1
    else:
        raise NotImplementedError("Bottleneck only uses stride 1 or 2")

    # Weights: OIHW -> (9*Cin, Cout), taps i-major / j-minor, BN scale folded.
    wmat = jnp.transpose(p["w"], (2, 3, 1, 0)).reshape(9 * cin, cout)
    wmat = (wmat * p["scale"][None, :]).astype(jnp.bfloat16)
    c2 = p["bias"].reshape(1, cout).astype(jnp.float32)

    tco = _n_tile(cout)
    rh = _row_tile(ho)

    in_specs = [pl.BlockSpec((1,) + pln.shape[1:],
                             lambda b, r, co: (b, 0, 0, 0))
                for pln in planes]
    in_specs += [
        pl.BlockSpec((9 * cin, tco), lambda b, r, co: (0, co)),
        pl.BlockSpec((1, tco), lambda b, r, co: (0, co)),
    ]
    out_spec = pl.BlockSpec((1, rh, wo, tco), lambda b, r, co: (b, r, 0, co))

    kernel = functools.partial(
        _conv3x3_kernel, n_planes=len(planes), tap_specs=tap_specs,
        row_tile=rh, extra_rows=extra_rows, wo=wo, relu=relu)

    out_itemsize = np.dtype(out_dtype).itemsize
    bytes_accessed = (sum(int(pln.size) for pln in planes) * 2
                      + wmat.size * 2 + cout * 4
                      + n * ho * wo * cout * out_itemsize)
    return pl.pallas_call(
        kernel,
        out_shape=jax.ShapeDtypeStruct((n, ho, wo, cout), out_dtype),
        grid=(n, ho // rh, cout // tco),
        in_specs=in_specs,
        out_specs=out_spec,
        compiler_params=pltpu.CompilerParams(
            dimension_semantics=("parallel", "parallel", "parallel"),
            vmem_limit_bytes=VMEM_LIMIT),
        cost_estimate=pl.CostEstimate(
            flops=int(2 * n * ho * wo * 9 * cin * cout), transcendentals=0,
            bytes_accessed=int(bytes_accessed)),
    )(*planes, wmat, c2)


# ---------------------------------------------------------------------------
# Bottleneck forward (matches the PyTorch module's dataflow)
# ---------------------------------------------------------------------------
def bottleneck_fwd(params, x_nchw, *, stride=1):
    # TODO(synk): in a full ResNet keep activations NHWC across blocks to avoid
    # these per-block layout transposes.
    x = jnp.transpose(x_nchw, (0, 2, 3, 1)).astype(jnp.bfloat16)   # NCHW->NHWC

    out = conv1x1_bn_act(x, params["conv1"], relu=True,
                         out_dtype=jnp.bfloat16)                    # conv1+bn1+relu
    out = conv3x3_bn_act(out, params["conv2"], stride=stride, relu=True,
                         out_dtype=jnp.bfloat16)                    # conv2+bn2+relu

    if params.get("downsample") is not None:
        residual = conv1x1_bn_act(x, params["downsample"], stride=stride,
                                  relu=False, out_dtype=jnp.bfloat16)
    else:
        residual = x                                                # bf16 identity

    # conv3+bn3, then `out += residual; out = relu(out)` fused in the epilogue.
    out = conv1x1_bn_act(out, params["conv3"], relu=True,
                         residual=residual, out_dtype=jnp.float32)
    return jnp.transpose(out, (0, 3, 1, 2))                         # NHWC->NCHW


# ---------------------------------------------------------------------------
# Parameter initialisation (deterministic; matches the PyTorch layer shapes)
# ---------------------------------------------------------------------------
def _kaiming(key, cout, cin, kh, kw):
    std = math.sqrt(2.0 / (cout * kh * kw))
    return std * jax.random.normal(key, (cout, cin, kh, kw), jnp.float32)


def _conv_bn(key, cin, cout, k):
    # BN folded at init (inference mode, fresh stats: gamma=1, beta=0, mu=0, var=1).
    gamma = jnp.ones((cout,), jnp.float32)
    beta = jnp.zeros((cout,), jnp.float32)
    mean = jnp.zeros((cout,), jnp.float32)
    var = jnp.ones((cout,), jnp.float32)
    scale = gamma / jnp.sqrt(var + BN_EPS)
    bias = beta - mean * scale
    return {"w": _kaiming(key, cout, cin, k, k), "scale": scale, "bias": bias}


def bottleneck_init(key, inplanes, planes, *, downsample=False):
    k1, k2, k3, k4 = jax.random.split(key, 4)
    return {
        "conv1": _conv_bn(k1, inplanes, planes, 1),
        "conv2": _conv_bn(k2, planes, planes, 3),
        "conv3": _conv_bn(k3, planes, planes * 4, 1),
        "downsample": _conv_bn(k4, inplanes, planes * 4, 1) if downsample else None,
    }


# ---------------------------------------------------------------------------
# Pure-JAX/XLA reference for numerical validation (f32)
# ---------------------------------------------------------------------------
def _reference_fwd(params, x_nchw, *, stride=1):
    x = jnp.transpose(x_nchw, (0, 2, 3, 1)).astype(jnp.float32)

    def conv_bn(x, p, k, s):
        w = jnp.transpose(p["w"], (2, 3, 1, 0)).astype(jnp.float32)   # HWIO
        pad = ((1, 1), (1, 1)) if k == 3 else ((0, 0), (0, 0))
        y = jax.lax.conv_general_dilated(
            x, w, window_strides=(s, s), padding=pad,
            dimension_numbers=("NHWC", "HWIO", "NHWC"))
        return y * p["scale"] + p["bias"]

    out = jax.nn.relu(conv_bn(x, params["conv1"], 1, 1))
    out = jax.nn.relu(conv_bn(out, params["conv2"], 3, stride))
    if params.get("downsample") is not None:
        res = conv_bn(x, params["downsample"], 1, stride)
    else:
        res = x
    out = jax.nn.relu(conv_bn(out, params["conv3"], 1, 1) + res)
    return jnp.transpose(out, (0, 3, 1, 2))


# ---------------------------------------------------------------------------
if __name__ == "__main__":
    root = jax.random.PRNGKey(0)
    kp1, kp2, kx = jax.random.split(root, 3)

    x = jax.random.normal(kx, (2, 64, 16, 16), jnp.float32)

    # Identity-residual block (stride=1, downsample=None): inplanes == planes*4.
    p_id = bottleneck_init(kp1, inplanes=64, planes=16, downsample=False)
    fwd_id = jax.jit(functools.partial(bottleneck_fwd, stride=1))
    y_id = jax.block_until_ready(fwd_id(p_id, x))
    assert y_id.shape == (2, 64, 16, 16), y_id.shape

    # Projection-residual block (stride=2, 1x1+BN downsample).
    p_dn = bottleneck_init(kp2, inplanes=64, planes=32, downsample=True)
    fwd_dn = jax.jit(functools.partial(bottleneck_fwd, stride=2))
    y_dn = jax.block_until_ready(fwd_dn(p_dn, x))
    assert y_dn.shape == (2, 128, 8, 8), y_dn.shape

    # Numerical check against the f32 XLA reference (bf16-MXU tolerance).
    r_id = _reference_fwd(p_id, x, stride=1)
    r_dn = _reference_fwd(p_dn, x, stride=2)
    for y, r in ((y_id, r_id), (y_dn, r_dn)):
        err = float(jnp.max(jnp.abs(y - r)) / (jnp.max(jnp.abs(r)) + 1e-6))
        assert err < 0.05, f"max normalized error {err}"

    assert bool(jnp.all(jnp.isfinite(y_id)))
    assert bool(jnp.all(jnp.isfinite(y_dn)))
    print("KERNEL_OK")
</pallas_src>

<mosaic_0001>
module attributes {stable_mosaic.version = 11 : i64} {
  func.func @_mm_bias_kernel(%arg0: i32, %arg1: i32, %arg2: memref<256x64xbf16, #tpu.memory_space<vmem>>, %arg3: memref<64x16xbf16, #tpu.memory_space<vmem>>, %arg4: memref<1x16xf32, #tpu.memory_space<vmem>>, %arg5: memref<256x16xbf16, #tpu.memory_space<vmem>>) attributes {dimension_semantics = [#tpu.dimension_semantics<parallel>, #tpu.dimension_semantics<parallel>], iteration_bounds = array<i64: 2, 1>, scalar_prefetch = 0 : i64, scratch_operands = 0 : i64, tpu.core_type = #tpu.core_type<tc>, window_params = [{transform_indices = @transform_0, window_bounds = array<i64: 256, 64>}, {transform_indices = @transform_1, window_bounds = array<i64: 64, 16>}, {transform_indices = @transform_2, window_bounds = array<i64: 1, 16>}, {transform_indices = @transform_3, window_bounds = array<i64: 256, 16>}]} {
    %c0 = arith.constant 0 : index
    %c0_0 = arith.constant 0 : index
    %0 = vector.load %arg2[%c0, %c0_0] : memref<256x64xbf16, #tpu.memory_space<vmem>>, vector<256x64xbf16>
    %c0_1 = arith.constant 0 : index
    %c0_2 = arith.constant 0 : index
    %1 = vector.load %arg3[%c0_1, %c0_2] : memref<64x16xbf16, #tpu.memory_space<vmem>>, vector<64x16xbf16>
    %cst = arith.constant dense<0.000000e+00> : vector<256x16xf32>
    %2 = tpu.matmul %0, %1, %cst {dimension_numbers = #tpu.dot_dimension_numbers<[1], [0], [0], [1], [0, 0, 1, 1], [], []>} : vector<256x64xbf16>, vector<64x16xbf16>, vector<256x16xf32> -> vector<256x16xf32>
    %c0_3 = arith.constant 0 : index
    %c0_4 = arith.constant 0 : index
    %3 = vector.load %arg4[%c0_3, %c0_4] : memref<1x16xf32, #tpu.memory_space<vmem>>, vector<1x16xf32>
    %4 = vector.broadcast %3 : vector<1x16xf32> to vector<256x16xf32>
    %5 = arith.addf %2, %4 : vector<256x16xf32>
    %cst_5 = arith.constant 0.000000e+00 : f32
    %6 = vector.broadcast %cst_5 : f32 to vector<256x16xf32>
    %7 = arith.maximumf %5, %6 : vector<256x16xf32>
    %8 = arith.truncf %7 : vector<256x16xf32> to vector<256x16xbf16>
    %c0_6 = arith.constant 0 : index
    %c0_7 = arith.constant 0 : index
    %9 = vector.load %arg5[%c0_6, %c0_7] : memref<256x16xbf16, #tpu.memory_space<vmem>>, vector<256x16xbf16>
    tpu.vector_store %arg5[%c0_6, %c0_7], %8 {strides = array<i32>} : memref<256x16xbf16, #tpu.memory_space<vmem>>, vector<256x16xbf16>,
    return
  }
  func.func @transform_0(%arg0: i32, %arg1: i32) -> (i32, i32) {
    %c0_i32 = arith.constant 0 : i32
    %c0_i32_0 = arith.constant 0 : i32
    return %arg0, %c0_i32 : i32, i32
  }
  func.func @transform_1(%arg0: i32, %arg1: i32) -> (i32, i32) {
    %c0_i32 = arith.constant 0 : i32
    %c0_i32_0 = arith.constant 0 : i32
    return %c0_i32, %arg1 : i32, i32
  }
  func.func @transform_2(%arg0: i32, %arg1: i32) -> (i32, i32) {
    %c0_i32 = arith.constant 0 : i32
    %c0_i32_0 = arith.constant 0 : i32
    return %c0_i32, %arg1 : i32, i32
  }
  func.func @transform_3(%arg0: i32, %arg1: i32) -> (i32, i32) {
    %c0_i32 = arith.constant 0 : i32
    return %arg0, %arg1 : i32, i32
  }
}

module attributes {stable_mosaic.version = 11 : i64} {
  func.func @_conv3x3_kernel(%arg0: i32, %arg1: i32, %arg2: i32, %arg3: memref<1x18x18x16xbf16, #tpu.memory_space<vmem>>, %arg4: memref<144x16xbf16, #tpu.memory_space<vmem>>, %arg5: memref<1x16xf32, #tpu.memory_space<vmem>>, %arg6: memref<1x8x16x16xbf16, #tpu.memory_space<vmem>>) attributes {dimension_semantics = [#tpu.dimension_semantics<parallel>, #tpu.dimension_semantics<parallel>, #tpu.dimension_semantics<parallel>], iteration_bounds = array<i64: 2, 2, 1>, scalar_prefetch = 0 : i64, scratch_operands = 0 : i64, tpu.core_type = #tpu.core_type<tc>, window_params = [{transform_indices = @transform_0, window_bounds = array<i64: 1, 18, 18, 16>}, {transform_indices = @transform_1, window_bounds = array<i64: 144, 16>}, {transform_indices = @transform_2, window_bounds = array<i64: 1, 16>}, {transform_indices = @transform_3, window_bounds = array<i64: 1, 8, 16, 16>}]} {
    %c8_i32 = arith.constant 8 : i32
    %0 = arith.muli %arg1, %c8_i32 : i32
    %1 = tpu.assume_multiple %0, 8 : i32
    %c0 = arith.constant 0 : index
    %2 = arith.index_cast %1 : i32 to index
    %c0_0 = arith.constant 0 : index
    %c0_1 = arith.constant 0 : index
    %3 = vector.load %arg3[%c0, %2, %c0_0, %c0_1] : memref<1x18x18x16xbf16, #tpu.memory_space<vmem>>, vector<1x10x18x16xbf16>
    %4 = vector.shape_cast %3 : vector<1x10x18x16xbf16> to vector<10x18x16xbf16>
    %5 = vector.extract_strided_slice %4 {offsets = [0, 0, 0], sizes = [8, 16, 16], strides = [1, 1, 1]} : vector<10x18x16xbf16> to vector<8x16x16xbf16>
    %6 = vector.extract_strided_slice %4 {offsets = [0, 1, 0], sizes = [8, 16, 16], strides = [1, 1, 1]} : vector<10x18x16xbf16> to vector<8x16x16xbf16>
    %7 = vector.extract_strided_slice %4 {offsets = [0, 2, 0], sizes = [8, 16, 16], strides = [1, 1, 1]} : vector<10x18x16xbf16> to vector<8x16x16xbf16>
    %8 = vector.extract_strided_slice %4 {offsets = [1, 0, 0], sizes = [8, 16, 16], strides = [1, 1, 1]} : vector<10x18x16xbf16> to vector<8x16x16xbf16>
    %9 = vector.extract_strided_slice %4 {offsets = [1, 1, 0], sizes = [8, 16, 16], strides = [1, 1, 1]} : vector<10x18x16xbf16> to vector<8x16x16xbf16>
    %10 = vector.extract_strided_slice %4 {offsets = [1, 2, 0], sizes = [8, 16, 16], strides = [1, 1, 1]} : vector<10x18x16xbf16> to vector<8x16x16xbf16>
    %11 = vector.extract_strided_slice %4 {offsets = [2, 0, 0], sizes = [8, 16, 16], strides = [1, 1, 1]} : vector<10x18x16xbf16> to vector<8x16x16xbf16>
    %12 = vector.extract_strided_slice %4 {offsets = [2, 1, 0], sizes = [8, 16, 16], strides = [1, 1, 1]} : vector<10x18x16xbf16> to vector<8x16x16xbf16>
    %13 = vector.extract_strided_slice %4 {offsets = [2, 2, 0], sizes = [8, 16, 16], strides = [1, 1, 1]} : vector<10x18x16xbf16> to vector<8x16x16xbf16>
    %14 = tpu.concatenate %5, %6, %7, %8, %9, %10, %11, %12, %13 in 2 : vector<8x16x16xbf16>, vector<8x16x16xbf16>, vector<8x16x16xbf16>, vector<8x16x16xbf16>, vector<8x16x16xbf16>, vector<8x16x16xbf16>, vector<8x16x16xbf16>, vector<8x16x16xbf16>, vector<8x16x16xbf16> -> vector<8x16x144xbf16>
    %15 = vector.shape_cast %14 : vector<8x16x144xbf16> to vector<128x144xbf16>
    %c0_2 = arith.constant 0 : index
    %c0_3 = arith.constant 0 : index
    %16 = vector.load %arg4[%c0_2, %c0_3] : memref<144x16xbf16, #tpu.memory_space<vmem>>, vector<144x16xbf16>
    %cst = arith.constant dense<0.000000e+00> : vector<128x16xf32>
    %17 = tpu.matmul %15, %16, %cst {dimension_numbers = #tpu.dot_dimension_numbers<[1], [0], [0], [1], [0, 0, 1, 1], [], []>} : vector<128x144xbf16>, vector<144x16xbf16>, vector<128x16xf32> -> vector<128x16xf32>
    %c0_4 = arith.constant 0 : index
    %c0_5 = arith.constant 0 : index
    %18 = vector.load %arg5[%c0_4, %c0_5] : memref<1x16xf32, #tpu.memory_space<vmem>>, vector<1x16xf32>
    %19 = vector.broadcast %18 : vector<1x16xf32> to vector<128x16xf32>
    %20 = arith.addf %17, %19 : vector<128x16xf32>
    %cst_6 = arith.constant 0.000000e+00 : f32
    %21 = vector.broadcast %cst_6 : f32 to vector<128x16xf32>
    %22 = arith.maximumf %20, %21 : vector<128x16xf32>
    %23 = vector.shape_cast %22 : vector<128x16xf32> to vector<1x8x16x16xf32>
    %24 = arith.truncf %23 : vector<1x8x16x16xf32> to vector<1x8x16x16xbf16>
    %c0_7 = arith.constant 0 : index
    %c0_8 = arith.constant 0 : index
    %c0_9 = arith.constant 0 : index
    %c0_10 = arith.constant 0 : index
    %25 = vector.load %arg6[%c0_7, %c0_8, %c0_9, %c0_10] : memref<1x8x16x16xbf16, #tpu.memory_space<vmem>>, vector<1x8x16x16xbf16>
    tpu.vector_store %arg6[%c0_7, %c0_8, %c0_9, %c0_10], %24 {strides = array<i32>} : memref<1x8x16x16xbf16, #tpu.memory_space<vmem>>, vector<1x8x16x16xbf16>,
    return
  }
  func.func @transform_0(%arg0: i32, %arg1: i32, %arg2: i32) -> (i32, i32, i32, i32) {
    %c0_i32 = arith.constant 0 : i32
    %c0_i32_0 = arith.constant 0 : i32
    %c0_i32_1 = arith.constant 0 : i32
    %c0_i32_2 = arith.constant 0 : i32
    return %arg0, %c0_i32, %c0_i32_0, %c0_i32_1 : i32, i32, i32, i32
  }
  func.func @transform_1(%arg0: i32, %arg1: i32, %arg2: i32) -> (i32, i32) {
    %c0_i32 = arith.constant 0 : i32
    %c0_i32_0 = arith.constant 0 : i32
    return %c0_i32, %arg2 : i32, i32
  }
  func.func @transform_2(%arg0: i32, %arg1: i32, %arg2: i32) -> (i32, i32) {
    %c0_i32 = arith.constant 0 : i32
    %c0_i32_0 = arith.constant 0 : i32
    return %c0_i32, %arg2 : i32, i32
  }
  func.func @transform_3(%arg0: i32, %arg1: i32, %arg2: i32) -> (i32, i32, i32, i32) {
    %c0_i32 = arith.constant 0 : i32
    %c0_i32_0 = arith.constant 0 : i32
    return %arg0, %arg1, %c0_i32, %arg2 : i32, i32, i32, i32
  }
}

module attributes {stable_mosaic.version = 11 : i64} {
  func.func @_mm_bias_kernel(%arg0: i32, %arg1: i32, %arg2: memref<256x16xbf16, #tpu.memory_space<vmem>>, %arg3: memref<16x64xbf16, #tpu.memory_space<vmem>>, %arg4: memref<1x64xf32, #tpu.memory_space<vmem>>, %arg5: memref<256x64xbf16, #tpu.memory_space<vmem>>, %arg6: memref<256x64xf32, #tpu.memory_space<vmem>>) attributes {dimension_semantics = [#tpu.dimension_semantics<parallel>, #tpu.dimension_semantics<parallel>], iteration_bounds = array<i64: 2, 1>, scalar_prefetch = 0 : i64, scratch_operands = 0 : i64, tpu.core_type = #tpu.core_type<tc>, window_params = [{transform_indices = @transform_0, window_bounds = array<i64: 256, 16>}, {transform_indices = @transform_1, window_bounds = array<i64: 16, 64>}, {transform_indices = @transform_2, window_bounds = array<i64: 1, 64>}, {transform_indices = @transform_3, window_bounds = array<i64: 256, 64>}, {transform_indices = @transform_4, window_bounds = array<i64: 256, 64>}]} {
    %c0 = arith.constant 0 : index
    %c0_0 = arith.constant 0 : index
    %0 = vector.load %arg2[%c0, %c0_0] : memref<256x16xbf16, #tpu.memory_space<vmem>>, vector<256x16xbf16>
    %c0_1 = arith.constant 0 : index
    %c0_2 = arith.constant 0 : index
    %1 = vector.load %arg3[%c0_1, %c0_2] : memref<16x64xbf16, #tpu.memory_space<vmem>>, vector<16x64xbf16>
    %cst = arith.constant dense<0.000000e+00> : vector<256x64xf32>
    %2 = tpu.matmul %0, %1, %cst {dimension_numbers = #tpu.dot_dimension_numbers<[1], [0], [0], [1], [0, 0, 1, 1], [], []>} : vector<256x16xbf16>, vector<16x64xbf16>, vector<256x64xf32> -> vector<256x64xf32>
    %c0_3 = arith.constant 0 : index
    %c0_4 = arith.constant 0 : index
    %3 = vector.load %arg4[%c0_3, %c0_4] : memref<1x64xf32, #tpu.memory_space<vmem>>, vector<1x64xf32>
    %4 = vector.broadcast %3 : vector<1x64xf32> to vector<256x64xf32>
    %5 = arith.addf %2, %4 : vector<256x64xf32>
    %c0_5 = arith.constant 0 : index
    %c0_6 = arith.constant 0 : index
    %6 = vector.load %arg5[%c0_5, %c0_6] : memref<256x64xbf16, #tpu.memory_space<vmem>>, vector<256x64xbf16>
    %7 = arith.extf %6 : vector<256x64xbf16> to vector<256x64xf32>
    %8 = arith.addf %5, %7 : vector<256x64xf32>
    %cst_7 = arith.constant 0.000000e+00 : f32
    %9 = vector.broadcast %cst_7 : f32 to vector<256x64xf32>
    %10 = arith.maximumf %8, %9 : vector<256x64xf32>
    %c0_8 = arith.constant 0 : index
    %c0_9 = arith.constant 0 : index
    %11 = vector.load %arg6[%c0_8, %c0_9] : memref<256x64xf32, #tpu.memory_space<vmem>>, vector<256x64xf32>
    tpu.vector_store %arg6[%c0_8, %c0_9], %10 {strides = array<i32>} : memref<256x64xf32, #tpu.memory_space<vmem>>, vector<256x64xf32>,
    return
  }
  func.func @transform_0(%arg0: i32, %arg1: i32) -> (i32, i32) {
    %c0_i32 = arith.constant 0 : i32
    %c0_i32_0 = arith.constant 0 : i32
    return %arg0, %c0_i32 : i32, i32
  }
  func.func @transform_1(%arg0: i32, %arg1: i32) -> (i32, i32) {
    %c0_i32 = arith.constant 0 : i32
    %c0_i32_0 = arith.constant 0 : i32
    return %c0_i32, %arg1 : i32, i32
  }
  func.func @transform_2(%arg0: i32, %arg1: i32) -> (i32, i32) {
    %c0_i32 = arith.constant 0 : i32
    %c0_i32_0 = arith.constant 0 : i32
    return %c0_i32, %arg1 : i32, i32
  }
  func.func @transform_3(%arg0: i32, %arg1: i32) -> (i32, i32) {
    %c0_i32 = arith.constant 0 : i32
    return %arg0, %arg1 : i32, i32
  }
  func.func @transform_4(%arg0: i32, %arg1: i32) -> (i32, i32) {
    %c0_i32 = arith.constant 0 : i32
    return %arg0, %arg1 : i32, i32
  }
}

</mosaic_0001>

<llo_original>
// kernel: bottleneck_fwd.3
$region0: #{bottleneck_fwd.3}
  #allocation0 [shape = 'u32[]', space=smem, size = 0x4, offset = 0x4, fixed_abs, tag = 'smem constant byte address 0x4 - core index']
  #allocation1 [shape = 'u32[144,128]{1,0:T(1,128)}', space=vmem, size = 0x12000, scoped, tag = 'internal scratch']
  %s0 = inlined_call_operand.vmem [shape: bf16[512,64], index: 0, kind: input, shape index: {}]
  %s1 = inlined_call_operand.vmem [shape: bf16[64,16], index: 1, kind: input, shape index: {}]
  %s2 = inlined_call_operand.vmem [shape: f32[1,16], index: 2, kind: input, shape index: {}]
  %s3 = inlined_call_operand.vmem [shape: bf16[512,16], index: 3, kind: output, shape index: {}]
  %s4 = sld [smem:[#allocation0]]
  $region45: #{bottleneck_fwd.3} parent=0
    _
  %s6 = ssub.s32 1, %s4
  %s7 = scalar_select 0, %s6, %s4
  loop: start=0, step=1, limit=4
  $region2: #{bottleneck_fwd.3} parent=0 // loop_pre_header
    _
  $region3: #{bottleneck_fwd.3} parent=0 // loop_header
    %s9 = sphi 0, %s13
    %p10 = scmp.ge.s32.totalorder %s9, 4
    %s16 = sphi 0, %s28
    %s17 = sphi 0, %s24
    %s18 = sphi 0, %s16
    %s19 = sphi 0, %s17
    %s20 = sphi 0, %s18
    %s21 = sphi 0, %s19
    %s31 = sphi 0, %s33
    %s34 = sphi 0, %s31
    %s35 = sphi 0, %s34
    %s51 = sphi 0, %s35
    %s57 = sphi 0, %s59
    %s60 = sphi 0, %s57
    %s61 = sphi 0, %s60
    %s77 = sphi 0, %s61
    %s83 = sphi 0, %s85
    %s86 = sphi 0, %s83
    %s87 = sphi 0, %s86
    %s103 = sphi 0, %s87
    %s111 = sphi 0, %s113
    %s114 = sphi 0, %s111
    %s115 = sphi 0, %s114
    %s131 = sphi 0, %s115
  $region4: #{bottleneck_fwd.3} parent=0 // loop_header_branch
    %12 = sbr.rel (%p10) target = $region8
  $region5: #{bottleneck_fwd.3} parent=0 // loop_body
    %s14 = ssub.s32 %s9, 1
    %s15 = ssub.s32 %s9, 2
    %s22 = sadd.s32 1, %s17
    %p23 = scmp.ge.s32.totalorder %s22, 1
    %s24 = scalar_select %p23, 0, %s22
    %s25 = sadd.s32 1, %s16
    %s26 = scalar_select %p23, %s25, %s16
    %p27 = scmp.ge.s32.totalorder %s26, 2
    %s28 = scalar_select %p27, 0, %s26
    %s29 = ssub.s32 %s16, %s28
    %p30 = scmp.eq.s32.totalorder %s29, 0
    %s32 = sadd.s32 %s31, 1
    %s33 = scalar_select %p30, %s31, %s32
    %p36 = pneg %p30
    %p37 = scmp.eq.s32.totalorder %s9, 1
    %p38 = por %p36, %p37
    %p39 = scmp.ne.s32.totalorder %s31, %s34
    %p40 = scmp.eq.s32.totalorder %s9, 0
    %p41 = por %p39, %p40
    %p42 = scmp.ne.s32.totalorder %s31, %s34
    %p43 = scmp.eq.s32.totalorder %s14, 1
    %p44 = por %p42, %p43
    %p45 = scmp.ne.s32.totalorder %s34, %s35
    %p46 = scmp.eq.s32.totalorder %s14, 0
    %p47 = por %p45, %p46
    %p48 = scmp.ne.s32.totalorder %s34, %s35
    %p49 = scmp.eq.s32.totalorder %s15, 1
    %p50 = por %p48, %p49
    %p52 = scmp.ne.s32.totalorder %s35, %s51
    %p53 = scmp.eq.s32.totalorder %s15, 0
    %p54 = por %p52, %p53
    %s55 = ssub.s32 %s17, %s24
    %p56 = scmp.eq.s32.totalorder %s55, 0
    %s58 = sadd.s32 %s57, 1
    %s59 = scalar_select %p56, %s57, %s58
    %p62 = pneg %p56
    %p63 = scmp.eq.s32.totalorder %s9, 1
    %p64 = por %p62, %p63
    %p65 = scmp.ne.s32.totalorder %s57, %s60
    %p66 = scmp.eq.s32.totalorder %s9, 0
    %p67 = por %p65, %p66
    %p68 = scmp.ne.s32.totalorder %s57, %s60
    %p69 = scmp.eq.s32.totalorder %s14, 1
    %p70 = por %p68, %p69
    %p71 = scmp.ne.s32.totalorder %s60, %s61
    %p72 = scmp.eq.s32.totalorder %s14, 0
    %p73 = por %p71, %p72
    %p74 = scmp.ne.s32.totalorder %s60, %s61
    %p75 = scmp.eq.s32.totalorder %s15, 1
    %p76 = por %p74, %p75
    %p78 = scmp.ne.s32.totalorder %s61, %s77
    %p79 = scmp.eq.s32.totalorder %s15, 0
    %p80 = por %p78, %p79
    %s81 = ssub.s32 %s17, %s24
    %p82 = scmp.eq.s32.totalorder %s81, 0
    %s84 = sadd.s32 %s83, 1
    %s85 = scalar_select %p82, %s83, %s84
    %p88 = pneg %p82
    %p89 = scmp.eq.s32.totalorder %s9, 1
    %p90 = por %p88, %p89
    %p91 = scmp.ne.s32.totalorder %s83, %s86
    %p92 = scmp.eq.s32.totalorder %s9, 0
    %p93 = por %p91, %p92
    %p94 = scmp.ne.s32.totalorder %s83, %s86
    %p95 = scmp.eq.s32.totalorder %s14, 1
    %p96 = por %p94, %p95
    %p97 = scmp.ne.s32.totalorder %s86, %s87
    %p98 = scmp.eq.s32.totalorder %s14, 0
    %p99 = por %p97, %p98
    %p100 = scmp.ne.s32.totalorder %s86, %s87
    %p101 = scmp.eq.s32.totalorder %s15, 1
    %p102 = por %p100, %p101
    %p104 = scmp.ne.s32.totalorder %s87, %s103
    %p105 = scmp.eq.s32.totalorder %s15, 0
    %p106 = por %p104, %p105
    %s107 = ssub.s32 %s16, %s28
    %s108 = ssub.s32 %s17, %s24
    %s109 = sor.u32 %s107, %s108
    %p110 = scmp.eq.s32.totalorder %s109, 0
    %s112 = sadd.s32 %s111, 1
    %s113 = scalar_select %p110, %s111, %s112
    %p116 = pneg %p110
    %p117 = scmp.eq.s32.totalorder %s9, 1
    %p118 = por %p116, %p117
    %p119 = scmp.ne.s32.totalorder %s111, %s114
    %p120 = scmp.eq.s32.totalorder %s9, 0
    %p121 = por %p119, %p120
    %p122 = scmp.ne.s32.totalorder %s111, %s114
    %p123 = scmp.eq.s32.totalorder %s14, 1
    %p124 = por %p122, %p123
    %p125 = scmp.ne.s32.totalorder %s114, %s115
    %p126 = scmp.eq.s32.totalorder %s14, 0
    %p127 = por %p125, %p126
    %p128 = scmp.ne.s32.totalorder %s114, %s115
    %p129 = scmp.eq.s32.totalorder %s15, 1
    %p130 = por %p128, %p129
    %p132 = scmp.ne.s32.totalorder %s115, %s131
    %p133 = scmp.eq.s32.totalorder %s15, 0
    %p134 = por %p132, %p133
    %p135 = scmp.le.s32.totalorder 1, %s9
    %p136 = scmp.lt.s32.totalorder %s9, 3
    %p137 = pnand %p135, %p136
    %p138 = pneg %p137
    // Predicated region
    $region9: #{bottleneck_fwd.3} parent=5 // pred_check
      _
    $region10: #{bottleneck_fwd.3} parent=5 // pred_check_branch
      %140 = sbr.rel (%p137) target = $region12
    $region11: #{bottleneck_fwd.3} parent=5 // pred_region
      %s141 = ssub.s32 %s9, 1
      // Predicated region
      $region13: #{bottleneck_fwd.3} parent=11 // pred_check
        %p142 = pneg %p73
      $region14: #{bottleneck_fwd.3} parent=11 // pred_check_branch
        %144 = sbr.rel (%p142) target = $region16
      $region15: #{bottleneck_fwd.3} parent=11 // pred_region
        %p145 = scmp.lt.s32.totalorder %s19, 0
        %s146 = scalar_select %p145, %s19, 0
        %s147 = smul.addr %s146, 4
        %s148 = scalar_lea.vmem %s1, %s147
      $region16: #{bottleneck_fwd.3} parent=11 // pred_fallthru
        _
      // Predicated region
      $region17: #{bottleneck_fwd.3} parent=11 // pred_check
        %p149 = pneg %p99
      $region18: #{bottleneck_fwd.3} parent=11 // pred_check_branch
        %151 = sbr.rel (%p149) target = $region20
      $region19: #{bottleneck_fwd.3} parent=11 // pred_region
        %p152 = scmp.lt.s32.totalorder %s19, 0
        %s153 = scalar_select %p152, %s19, 0
        %s154 = scalar_lea.vmem %s2, %s153
      $region20: #{bottleneck_fwd.3} parent=11 // pred_fallthru
        _
    $region12: #{bottleneck_fwd.3} parent=5 // pred_fallthru
      _
    %p155 = scmp.lt.s32.totalorder %s9, 2
    // Predicated region
    $region21: #{bottleneck_fwd.3} parent=5 // pred_check
      %p156 = pneg %p155
    $region22: #{bottleneck_fwd.3} parent=5 // pred_check_branch
      %158 = sbr.rel (%p156) target = $region24
    $region23: #{bottleneck_fwd.3} parent=5 // pred_region
      // Predicated region
      $region25: #{bottleneck_fwd.3} parent=23 // pred_check
        %p159 = pneg %p41
      $region26: #{bottleneck_fwd.3} parent=23 // pred_check_branch
        %161 = sbr.rel (%p159) target = $region28
      $region27: #{bottleneck_fwd.3} parent=23 // pred_region
        %s162 = smul.u32 32, %s16
        %p163 = scmp.lt.s32.totalorder %s162, 63
        %s164 = scalar_select %p163, %s162, 63
        %s165 = smul.addr %s164, 4
        %s166 = scalar_lea.vmem %s0, %s165
        %s167 = smul.u32 32, %s16
      $region28: #{bottleneck_fwd.3} parent=23 // pred_fallthru
        _
    $region24: #{bottleneck_fwd.3} parent=5 // pred_fallthru
      _
    %p168 = scmp.le.s32.totalorder 1, %s9
    %p169 = scmp.lt.s32.totalorder %s9, 3
    %p170 = pnand %p168, %p169
    %p171 = pneg %p170
    // Predicated region
    $region29: #{bottleneck_fwd.3} parent=5 // pred_check
      _
    $region30: #{bottleneck_fwd.3} parent=5 // pred_check_branch
      %173 = sbr.rel (%p170) target = $region32
    $region31: #{bottleneck_fwd.3} parent=5 // pred_region
      %s174 = ssub.s32 %s9, 1
      %s175 = smul.u32 32, %s18
      %p176 = scmp.lt.s32.totalorder %s175, 63
      %s177 = scalar_select %p176, %s175, 63
      %s178 = smul.addr %s177, 4
      %s179 = scalar_lea.vmem %s0, %s178
      %p180 = pneg %p47
      %p181 = pneg %p44
      %p182 = scmp.lt.s32.totalorder %s19, 0
      %s183 = scalar_select %p182, %s19, 0
      %s184 = smul.addr %s183, 4
      %s185 = scalar_lea.vmem %s1, %s184
      %p186 = pneg %p73
      %p187 = pneg %p70
      %p188 = scmp.lt.s32.totalorder %s19, 0
      %s189 = scalar_select %p188, %s19, 0
      %s190 = scalar_lea.vmem %s2, %s189
      %p191 = pneg %p99
      %p192 = pneg %p96
      %p193 = pneg %p127
      %p194 = pneg %p124
      %s195 = smul.u32 32, %s18
      %p196 = scmp.lt.s32.totalorder %s195, 63
      %s197 = scalar_select %p196, %s195, 63
      %p198 = scmp.lt.s32.totalorder %s19, 0
      %s199 = scalar_select %p198, %s19, 0
      %s200 = sadd.s32 %s199, %s197
      %s201 = smul.addr %s200, 4
      %s202 = scalar_lea.vmem %s3, %s201
      %s203 = smul.u32 32, %s18
      %p204 = scmp.lt.s32.totalorder %s203, 63
      %s205 = scalar_select %p204, %s203, 63
      %s206 = smul.addr %s205, 4
      %s207 = scalar_lea.vmem %s0, %s206
      %s208 = smul.u32 32, %s18
      %p209 = scmp.lt.s32.totalorder %s19, 0
      %s210 = scalar_select %p209, %s19, 0
      %s211 = smul.addr %s210, 4
      %s212 = scalar_lea.vmem %s1, %s211
      %p213 = scmp.lt.s32.totalorder %s19, 0
      %s214 = scalar_select %p213, %s19, 0
      %s215 = scalar_lea.vmem %s2, %s214
      %s216 = smul.u32 32, %s18
      %p217 = scmp.lt.s32.totalorder %s216, 63
      %s218 = scalar_select %p217, %s216, 63
      %p219 = scmp.lt.s32.totalorder %s19, 0
      %s220 = scalar_select %p219, %s19, 0
      %s221 = sadd.s32 %s220, %s218
      %s222 = smul.addr %s221, 4
      %s223 = scalar_lea.vmem %s3, %s222
      %s224 = smul.u32 32, %s18
      %v226 = vld [vmem:[%s207] sm:$0xf]
      %v227 = vld [vmem:[%s207 + $0x4] sm:$0xf]
      %v228 = vld [vmem:[%s207 + $0x8] sm:$0xf]
      %v229 = vld [vmem:[%s207 + $0xc] sm:$0xf]
      %v230 = vld [vmem:[%s207 + $0x10] sm:$0xf]
      %v231 = vld [vmem:[%s207 + $0x14] sm:$0xf]
      %v232 = vld [vmem:[%s207 + $0x18] sm:$0xf]
      %v233 = vld [vmem:[%s207 + $0x1c] sm:$0xf]
      %v234 = vld [vmem:[%s207 + $0x20] sm:$0xf]
      %v235 = vld [vmem:[%s207 + $0x24] sm:$0xf]
      %v236 = vld [vmem:[%s207 + $0x28] sm:$0xf]
      %v237 = vld [vmem:[%s207 + $0x2c] sm:$0xf]
      %v238 = vld [vmem:[%s207 + $0x30] sm:$0xf]
      %v239 = vld [vmem:[%s207 + $0x34] sm:$0xf]
      %v240 = vld [vmem:[%s207 + $0x38] sm:$0xf]
      %v241 = vld [vmem:[%s207 + $0x3c] sm:$0xf]
      %v242 = vld [vmem:[%s207 + $0x40] sm:$0xf]
      %v243 = vld [vmem:[%s207 + $0x44] sm:$0xf]
      %v244 = vld [vmem:[%s207 + $0x48] sm:$0xf]
      %v245 = vld [vmem:[%s207 + $0x4c] sm:$0xf]
      %v246 = vld [vmem:[%s207 + $0x50] sm:$0xf]
      %v247 = vld [vmem:[%s207 + $0x54] sm:$0xf]
      %v248 = vld [vmem:[%s207 + $0x58] sm:$0xf]
      %v249 = vld [vmem:[%s207 + $0x5c] sm:$0xf]
      %v250 = vld [vmem:[%s207 + $0x60] sm:$0xf]
      %v251 = vld [vmem:[%s207 + $0x64] sm:$0xf]
      %v252 = vld [vmem:[%s207 + $0x68] sm:$0xf]
      %v253 = vld [vmem:[%s207 + $0x6c] sm:$0xf]
      %v254 = vld [vmem:[%s207 + $0x70] sm:$0xf]
      %v255 = vld [vmem:[%s207 + $0x74] sm:$0xf]
      %v256 = vld [vmem:[%s207 + $0x78] sm:$0xf]
      %v257 = vld [vmem:[%s207 + $0x7c] sm:$0xf]
      %v258 = vld [vmem:[%s212] sm:$0xf]
      %v259 = vld [vmem:[%s212 + $0x4] sm:$0xf]
      %v260 = vld [vmem:[%s212 + $0x8] sm:$0xf]
      %v261 = vld [vmem:[%s212 + $0xc] sm:$0xf]
      %v262 = vld [vmem:[%s212 + $0x10] sm:$0xf]
      %v263 = vld [vmem:[%s212 + $0x14] sm:$0xf]
      %v264 = vld [vmem:[%s212 + $0x18] sm:$0xf]
      %v265 = vld [vmem:[%s212 + $0x1c] sm:$0xf]
      %v266 = vld [vmem:[%s215] sm:$0x1]
      %v268 = vlaneseq
      %v269 = vshrl.u32 %v268, 7
      %v270 = vsub.s32 0, %v269
      %v271 = vrot.slane %v266, %v270
      %v305 = vunpack.c.l.b16 %v226
      %v306 = vunpack.c.l.b16 %v227
      %v307 = vunpack.c.l.b16 %v228
      %v308 = vunpack.c.l.b16 %v229
      %v309 = vunpack.c.l.b16 %v230
      %v310 = vunpack.c.l.b16 %v231
      %v311 = vunpack.c.l.b16 %v232
      %v312 = vunpack.c.l.b16 %v233
      %v313 = vunpack.c.l.b16 %v234
      %v314 = vunpack.c.l.b16 %v235
      %v315 = vunpack.c.l.b16 %v236
      %v316 = vunpack.c.l.b16 %v237
      %v317 = vunpack.c.l.b16 %v238
      %v318 = vunpack.c.l.b16 %v239
      %v319 = vunpack.c.l.b16 %v240
      %v320 = vunpack.c.l.b16 %v241
      %v321 = vunpack.c.l.b16 %v242
      %v322 = vunpack.c.l.b16 %v243
      %v323 = vunpack.c.l.b16 %v244
      %v324 = vunpack.c.l.b16 %v245
      %v325 = vunpack.c.l.b16 %v246
      %v326 = vunpack.c.l.b16 %v247
      %v327 = vunpack.c.l.b16 %v248
      %v328 = vunpack.c.l.b16 %v249
      %v329 = vunpack.c.l.b16 %v250
      %v330 = vunpack.c.l.b16 %v251
      %v331 = vunpack.c.l.b16 %v252
      %v332 = vunpack.c.l.b16 %v253
      %v333 = vunpack.c.l.b16 %v254
      %v334 = vunpack.c.l.b16 %v255
      %v335 = vunpack.c.l.b16 %v256
      %v336 = vunpack.c.l.b16 %v257
      %v337 = vpack.c.b16 %v306, %v305
      %v338 = vpack.c.b16 %v308, %v307
      %v339 = vpack.c.b16 %v310, %v309
      %v340 = vpack.c.b16 %v312, %v311
      %v341 = vpack.c.b16 %v314, %v313
      %v342 = vpack.c.b16 %v316, %v315
      %v343 = vpack.c.b16 %v318, %v317
      %v344 = vpack.c.b16 %v320, %v319
      %v345 = vpack.c.b16 %v322, %v321
      %v346 = vpack.c.b16 %v324, %v323
      %v347 = vpack.c.b16 %v326, %v325
      %v348 = vpack.c.b16 %v328, %v327
      %v349 = vpack.c.b16 %v330, %v329
      %v350 = vpack.c.b16 %v332, %v331
      %v351 = vpack.c.b16 %v334, %v333
      %v352 = vpack.c.b16 %v336, %v335
      %v361 = vunpack.c.l.b16 %v258
      %v362 = vunpack.c.l.b16 %v259
      %v363 = vunpack.c.l.b16 %v260
      %v364 = vunpack.c.l.b16 %v261
      %v365 = vunpack.c.l.b16 %v262
      %v366 = vunpack.c.l.b16 %v263
      %v367 = vunpack.c.l.b16 %v264
      %v368 = vunpack.c.l.b16 %v265
      %v369 = vpack.c.b16 %v362, %v361
      %v370 = vpack.c.b16 %v364, %v363
      %v371 = vpack.c.b16 %v366, %v365
      %v372 = vpack.c.b16 %v368, %v367
      %vm377 = vcmask 523264
      %v379 = vsel %vm377, %v337, 0
      %v382 = vsel %vm377, %v338, 0
      %v385 = vsel %vm377, %v339, 0
      %v388 = vsel %vm377, %v340, 0
      %v391 = vsel %vm377, %v341, 0
      %v394 = vsel %vm377, %v342, 0
      %v397 = vsel %vm377, %v343, 0
      %v400 = vsel %vm377, %v344, 0
      %v403 = vsel %vm377, %v345, 0
      %v406 = vsel %vm377, %v346, 0
      %v409 = vsel %vm377, %v347, 0
      %v412 = vsel %vm377, %v348, 0
      %v415 = vsel %vm377, %v349, 0
      %v418 = vsel %vm377, %v350, 0
      %v421 = vsel %vm377, %v351, 0
      %v424 = vsel %vm377, %v352, 0
      %426 = vmatprep.subr.bf16.mxu0 0
      %427 = vmatpush1.bf16.msra.mxu0 %v369
      %428 = vmatprep.subr.bf16.mxu0 0
      %429 = vmatpush1.bf16.msra.mxu0 %v370
      %430 = vmatprep.subr.bf16.mxu0 0
      %431 = vmatpush1.bf16.msra.mxu0 %v371
      %432 = vmatprep.subr.bf16.mxu0 0
      %433 = vmatpush1.bf16.msra.mxu0 %v372
      %434 = vmatprep.subr.bf16.mxu0 0
      %435 = vmatpush1.bf16.msra.mxu0 0
      %436 = vmatprep.subr.bf16.mxu0 0
      %437 = vmatpush1.bf16.msra.mxu0 0
      %438 = vmatprep.subr.bf16.mxu0 0
      %439 = vmatpush1.bf16.msra.mxu0 0
      %440 = vmatprep.subr.bf16.mxu0 0
      %441 = vmatpush1.bf16.msra.mxu0 0
      %442 = vmatprep.subr.bf16.mxu0 0
      %443 = vmatpush1.bf16.msra.mxu0 0
      %444 = vmatprep.subr.bf16.mxu0 0
      %445 = vmatpush1.bf16.msra.mxu0 0
      %446 = vmatprep.subr.bf16.mxu0 0
      %447 = vmatpush1.bf16.msra.mxu0 0
      %448 = vmatprep.subr.bf16.mxu0 0
      %449 = vmatpush1.bf16.msra.mxu0 0
      %450 = vmatprep.subr.bf16.mxu0 0
      %451 = vmatpush1.bf16.msra.mxu0 0
      %452 = vmatprep.subr.bf16.mxu0 0
      %453 = vmatpush1.bf16.msra.mxu0 0
      %454 = vmatprep.subr.bf16.mxu0 0
      %455 = vmatpush1.bf16.msra.mxu0 0
      %456 = vmatprep.subr.bf16.mxu0 0
      %457 = vmatpush1.bf16.msra.mxu0 0
      %458 = vmatprep.mubr.bf16.mxu0 0
      %459 = vmatmul.mubr.bf16.gmra.mrb[0].mxu0 %v379
      %v460 = vpop.f32.mrb[0].mxu0
      %v461 = vadd.f32 %v271, %v460
      %v462 = vpop.f32.mrb[0].mxu0
      %v463 = vpop.f32.mrb[0].mxu0
      %v464 = vadd.f32 %v271, %v463
      %v465 = vpop.f32.mrb[0].mxu0
      %466 = vmatprep.mubr.bf16.mxu0 0
      %467 = vmatmul.mubr.bf16.gmra.mrb[0].mxu0 %v382
      %v468 = vpop.f32.mrb[0].mxu0
      %v469 = vadd.f32 %v271, %v468
      %v470 = vpop.f32.mrb[0].mxu0
      %v471 = vpop.f32.mrb[0].mxu0
      %v472 = vadd.f32 %v271, %v471
      %v473 = vpop.f32.mrb[0].mxu0
      %474 = vmatprep.mubr.bf16.mxu0 0
      %475 = vmatmul.mubr.bf16.gmra.mrb[0].mxu0 %v385
      %v476 = vpop.f32.mrb[0].mxu0
      %v477 = vadd.f32 %v271, %v476
      %v478 = vpop.f32.mrb[0].mxu0
      %v479 = vpop.f32.mrb[0].mxu0
      %v480 = vadd.f32 %v271, %v479
      %v481 = vpop.f32.mrb[0].mxu0
      %482 = vmatprep.mubr.bf16.mxu0 0
      %483 = vmatmul.mubr.bf16.gmra.mrb[0].mxu0 %v388
      %v484 = vpop.f32.mrb[0].mxu0
      %v485 = vadd.f32 %v271, %v484
      %v486 = vpop.f32.mrb[0].mxu0
      %v487 = vpop.f32.mrb[0].mxu0
      %v488 = vadd.f32 %v271, %v487
      %v489 = vpop.f32.mrb[0].mxu0
      %490 = vmatprep.mubr.bf16.mxu0 0
      %491 = vmatmul.mubr.bf16.gmra.mrb[0].mxu0 %v391
      %v492 = vpop.f32.mrb[0].mxu0
      %v493 = vadd.f32 %v271, %v492
      %v494 = vpop.f32.mrb[0].mxu0
      %v495 = vpop.f32.mrb[0].mxu0
      %v496 = vadd.f32 %v271, %v495
      %v497 = vpop.f32.mrb[0].mxu0
      %498 = vmatprep.mubr.bf16.mxu0 0
      %499 = vmatmul.mubr.bf16.gmra.mrb[0].mxu0 %v394
      %v500 = vpop.f32.mrb[0].mxu0
      %v501 = vadd.f32 %v271, %v500
      %v502 = vpop.f32.mrb[0].mxu0
      %v503 = vpop.f32.mrb[0].mxu0
      %v504 = vadd.f32 %v271, %v503
      %v505 = vpop.f32.mrb[0].mxu0
      %506 = vmatprep.mubr.bf16.mxu0 0
      %507 = vmatmul.mubr.bf16.gmra.mrb[0].mxu0 %v397
      %v508 = vpop.f32.mrb[0].mxu0
      %v509 = vadd.f32 %v271, %v508
      %v510 = vpop.f32.mrb[0].mxu0
      %v511 = vpop.f32.mrb[0].mxu0
      %v512 = vadd.f32 %v271, %v511
      %v513 = vpop.f32.mrb[0].mxu0
      %514 = vmatprep.mubr.bf16.mxu0 0
      %515 = vmatmul.mubr.bf16.gmra.mrb[0].mxu0 %v400
      %v516 = vpop.f32.mrb[0].mxu0
      %v517 = vadd.f32 %v271, %v516
      %v518 = vpop.f32.mrb[0].mxu0
      %v519 = vpop.f32.mrb[0].mxu0
      %v520 = vadd.f32 %v271, %v519
      %v521 = vpop.f32.mrb[0].mxu0
      %522 = vmatprep.mubr.bf16.mxu0 0
      %523 = vmatmul.mubr.bf16.gmra.mrb[0].mxu0 %v403
      %v524 = vpop.f32.mrb[0].mxu0
      %v525 = vadd.f32 %v271, %v524
      %v526 = vpop.f32.mrb[0].mxu0
      %v527 = vpop.f32.mrb[0].mxu0
      %v528 = vadd.f32 %v271, %v527
      %v529 = vpop.f32.mrb[0].mxu0
      %530 = vmatprep.mubr.bf16.mxu0 0
      %531 = vmatmul.mubr.bf16.gmra.mrb[0].mxu0 %v406
      %v532 = vpop.f32.mrb[0].mxu0
      %v533 = vadd.f32 %v271, %v532
      %v534 = vpop.f32.mrb[0].mxu0
      %v535 = vpop.f32.mrb[0].mxu0
      %v536 = vadd.f32 %v271, %v535
      %v537 = vpop.f32.mrb[0].mxu0
      %538 = vmatprep.mubr.bf16.mxu0 0
      %539 = vmatmul.mubr.bf16.gmra.mrb[0].mxu0 %v409
      %v540 = vpop.f32.mrb[0].mxu0
      %v541 = vadd.f32 %v271, %v540
      %v542 = vpop.f32.mrb[0].mxu0
      %v543 = vpop.f32.mrb[0].mxu0
      %v544 = vadd.f32 %v271, %v543
      %v545 = vpop.f32.mrb[0].mxu0
      %546 = vmatprep.mubr.bf16.mxu0 0
      %547 = vmatmul.mubr.bf16.gmra.mrb[0].mxu0 %v412
      %v548 = vpop.f32.mrb[0].mxu0
      %v549 = vadd.f32 %v271, %v548
      %v550 = vpop.f32.mrb[0].mxu0
      %v551 = vpop.f32.mrb[0].mxu0
      %v552 = vadd.f32 %v271, %v551
      %v553 = vpop.f32.mrb[0].mxu0
      %554 = vmatprep.mubr.bf16.mxu0 0
      %555 = vmatmul.mubr.bf16.gmra.mrb[0].mxu0 %v415
      %v556 = vpop.f32.mrb[0].mxu0
      %v557 = vadd.f32 %v271, %v556
      %v558 = vpop.f32.mrb[0].mxu0
      %v559 = vpop.f32.mrb[0].mxu0
      %v560 = vadd.f32 %v271, %v559
      %v561 = vpop.f32.mrb[0].mxu0
      %562 = vmatprep.mubr.bf16.mxu0 0
      %563 = vmatmul.mubr.bf16.gmra.mrb[0].mxu0 %v418
      %v564 = vpop.f32.mrb[0].mxu0
      %v565 = vadd.f32 %v271, %v564
      %v566 = vpop.f32.mrb[0].mxu0
      %v567 = vpop.f32.mrb[0].mxu0
      %v568 = vadd.f32 %v271, %v567
      %v569 = vpop.f32.mrb[0].mxu0
      %570 = vmatprep.mubr.bf16.mxu0 0
      %571 = vmatmul.mubr.bf16.gmra.mrb[0].mxu0 %v421
      %v572 = vpop.f32.mrb[0].mxu0
      %v573 = vadd.f32 %v271, %v572
      %v574 = vpop.f32.mrb[0].mxu0
      %v575 = vpop.f32.mrb[0].mxu0
      %v576 = vadd.f32 %v271, %v575
      %v577 = vpop.f32.mrb[0].mxu0
      %578 = vmatprep.mubr.bf16.mxu0 0
      %579 = vmatmul.mubr.bf16.gmra.mrb[0].mxu0 %v424
      %v580 = vpop.f32.mrb[0].mxu0
      %v581 = vadd.f32 %v271, %v580
      %v582 = vpop.f32.mrb[0].mxu0
      %v583 = vpop.f32.mrb[0].mxu0
      %v584 = vadd.f32 %v271, %v583
      %v585 = vpop.f32.mrb[0].mxu0
      %586 = vdwg.mxu0
      %v587 = vmax.f32 %v461, 0.0
      %v588 = vmax.f32 %v464, 0.0
      %v589 = vmax.f32 %v469, 0.0
      %v590 = vmax.f32 %v472, 0.0
      %v591 = vmax.f32 %v477, 0.0
      %v592 = vmax.f32 %v480, 0.0
      %v593 = vmax.f32 %v485, 0.0
      %v594 = vmax.f32 %v488, 0.0
      %v595 = vmax.f32 %v493, 0.0
      %v596 = vmax.f32 %v496, 0.0
      %v597 = vmax.f32 %v501, 0.0
      %v598 = vmax.f32 %v504, 0.0
      %v599 = vmax.f32 %v509, 0.0
      %v600 = vmax.f32 %v512, 0.0
      %v601 = vmax.f32 %v517, 0.0
      %v602 = vmax.f32 %v520, 0.0
      %v603 = vmax.f32 %v525, 0.0
      %v604 = vmax.f32 %v528, 0.0
      %v605 = vmax.f32 %v533, 0.0
      %v606 = vmax.f32 %v536, 0.0
      %v607 = vmax.f32 %v541, 0.0
      %v608 = vmax.f32 %v544, 0.0
      %v609 = vmax.f32 %v549, 0.0
      %v610 = vmax.f32 %v552, 0.0
      %v611 = vmax.f32 %v557, 0.0
      %v612 = vmax.f32 %v560, 0.0
      %v613 = vmax.f32 %v565, 0.0
      %v614 = vmax.f32 %v568, 0.0
      %v615 = vmax.f32 %v573, 0.0
      %v616 = vmax.f32 %v576, 0.0
      %v617 = vmax.f32 %v581, 0.0
      %v618 = vmax.f32 %v584, 0.0
      %v619 = vpack.c.bf16 %v588, %v587
      %v620 = vpack.c.bf16 %v590, %v589
      %v621 = vpack.c.bf16 %v592, %v591
      %v622 = vpack.c.bf16 %v594, %v593
      %v623 = vpack.c.bf16 %v596, %v595
      %v624 = vpack.c.bf16 %v598, %v597
      %v625 = vpack.c.bf16 %v600, %v599
      %v626 = vpack.c.bf16 %v602, %v601
      %v627 = vpack.c.bf16 %v604, %v603
      %v628 = vpack.c.bf16 %v606, %v605
      %v629 = vpack.c.bf16 %v608, %v607
      %v630 = vpack.c.bf16 %v610, %v609
      %v631 = vpack.c.bf16 %v612, %v611
      %v632 = vpack.c.bf16 %v614, %v613
      %v633 = vpack.c.bf16 %v616, %v615
      %v634 = vpack.c.bf16 %v618, %v617
      %v651 = vunpack.c.l.b16 %v619
      %v652 = vunpack.c.h.b16 %v619
      %v653 = vunpack.c.l.b16 %v620
      %v654 = vunpack.c.h.b16 %v620
      %v655 = vunpack.c.l.b16 %v621
      %v656 = vunpack.c.h.b16 %v621
      %v657 = vunpack.c.l.b16 %v622
      %v658 = vunpack.c.h.b16 %v622
      %v659 = vunpack.c.l.b16 %v623
      %v660 = vunpack.c.h.b16 %v623
      %v661 = vunpack.c.l.b16 %v624
      %v662 = vunpack.c.h.b16 %v624
      %v663 = vunpack.c.l.b16 %v625
      %v664 = vunpack.c.h.b16 %v625
      %v665 = vunpack.c.l.b16 %v626
      %v666 = vunpack.c.h.b16 %v626
      %v667 = vunpack.c.l.b16 %v627
      %v668 = vunpack.c.h.b16 %v627
      %v669 = vunpack.c.l.b16 %v628
      %v670 = vunpack.c.h.b16 %v628
      %v671 = vunpack.c.l.b16 %v629
      %v672 = vunpack.c.h.b16 %v629
      %v673 = vunpack.c.l.b16 %v630
      %v674 = vunpack.c.h.b16 %v630
      %v675 = vunpack.c.l.b16 %v631
      %v676 = vunpack.c.h.b16 %v631
      %v677 = vunpack.c.l.b16 %v632
      %v678 = vunpack.c.h.b16 %v632
      %v679 = vunpack.c.l.b16 %v633
      %v680 = vunpack.c.h.b16 %v633
      %v681 = vunpack.c.l.b16 %v634
      %v682 = vunpack.c.h.b16 %v634
      %v683 = vpack.c.b16 %v651, %v651
      %v684 = vpack.c.b16 %v652, %v652
      %v685 = vpack.c.b16 %v653, %v653
      %v686 = vpack.c.b16 %v654, %v654
      %v687 = vpack.c.b16 %v655, %v655
      %v688 = vpack.c.b16 %v656, %v656
      %v689 = vpack.c.b16 %v657, %v657
      %v690 = vpack.c.b16 %v658, %v658
      %v691 = vpack.c.b16 %v659, %v659
      %v692 = vpack.c.b16 %v660, %v660
      %v693 = vpack.c.b16 %v661, %v661
      %v694 = vpack.c.b16 %v662, %v662
      %v695 = vpack.c.b16 %v663, %v663
      %v696 = vpack.c.b16 %v664, %v664
      %v697 = vpack.c.b16 %v665, %v665
      %v698 = vpack.c.b16 %v666, %v666
      %v699 = vpack.c.b16 %v667, %v667
      %v700 = vpack.c.b16 %v668, %v668
      %v701 = vpack.c.b16 %v669, %v669
      %v702 = vpack.c.b16 %v670, %v670
      %v703 = vpack.c.b16 %v671, %v671
      %v704 = vpack.c.b16 %v672, %v672
      %v705 = vpack.c.b16 %v673, %v673
      %v706 = vpack.c.b16 %v674, %v674
      %v707 = vpack.c.b16 %v675, %v675
      %v708 = vpack.c.b16 %v676, %v676
      %v709 = vpack.c.b16 %v677, %v677
      %v710 = vpack.c.b16 %v678, %v678
      %v711 = vpack.c.b16 %v679, %v679
      %v712 = vpack.c.b16 %v680, %v680
      %v713 = vpack.c.b16 %v681, %v681
      %v714 = vpack.c.b16 %v682, %v682
      %vm747 = vcmask 125952
      %748 = vst.msk [vmem:[%s223] sm:$0xf] %vm747, %v683
      %749 = vst.msk [vmem:[%s223 + $0x4] sm:$0xf] %vm747, %v684
      %750 = vst.msk [vmem:[%s223 + $0x8] sm:$0xf] %vm747, %v685
      %751 = vst.msk [vmem:[%s223 + $0xc] sm:$0xf] %vm747, %v686
      %752 = vst.msk [vmem:[%s223 + $0x10] sm:$0xf] %vm747, %v687
      %753 = vst.msk [vmem:[%s223 + $0x14] sm:$0xf] %vm747, %v688
      %754 = vst.msk [vmem:[%s223 + $0x18] sm:$0xf] %vm747, %v689
      %755 = vst.msk [vmem:[%s223 + $0x1c] sm:$0xf] %vm747, %v690
      %756 = vst.msk [vmem:[%s223 + $0x20] sm:$0xf] %vm747, %v691
      %757 = vst.msk [vmem:[%s223 + $0x24] sm:$0xf] %vm747, %v692
      %758 = vst.msk [vmem:[%s223 + $0x28] sm:$0xf] %vm747, %v693
      %759 = vst.msk [vmem:[%s223 + $0x2c] sm:$0xf] %vm747, %v694
      %760 = vst.msk [vmem:[%s223 + $0x30] sm:$0xf] %vm747, %v695
      %761 = vst.msk [vmem:[%s223 + $0x34] sm:$0xf] %vm747, %v696
      %762 = vst.msk [vmem:[%s223 + $0x38] sm:$0xf] %vm747, %v697
      %763 = vst.msk [vmem:[%s223 + $0x3c] sm:$0xf] %vm747, %v698
      %764 = vst.msk [vmem:[%s223 + $0x40] sm:$0xf] %vm747, %v699
      %765 = vst.msk [vmem:[%s223 + $0x44] sm:$0xf] %vm747, %v700
      %766 = vst.msk [vmem:[%s223 + $0x48] sm:$0xf] %vm747, %v701
      %767 = vst.msk [vmem:[%s223 + $0x4c] sm:$0xf] %vm747, %v702
      %768 = vst.msk [vmem:[%s223 + $0x50] sm:$0xf] %vm747, %v703
      %769 = vst.msk [vmem:[%s223 + $0x54] sm:$0xf] %vm747, %v704
      %770 = vst.msk [vmem:[%s223 + $0x58] sm:$0xf] %vm747, %v705
      %771 = vst.msk [vmem:[%s223 + $0x5c] sm:$0xf] %vm747, %v706
      %772 = vst.msk [vmem:[%s223 + $0x60] sm:$0xf] %vm747, %v707
      %773 = vst.msk [vmem:[%s223 + $0x64] sm:$0xf] %vm747, %v708
      %774 = vst.msk [vmem:[%s223 + $0x68] sm:$0xf] %vm747, %v709
      %775 = vst.msk [vmem:[%s223 + $0x6c] sm:$0xf] %vm747, %v710
      %776 = vst.msk [vmem:[%s223 + $0x70] sm:$0xf] %vm747, %v711
      %777 = vst.msk [vmem:[%s223 + $0x74] sm:$0xf] %vm747, %v712
      %778 = vst.msk [vmem:[%s223 + $0x78] sm:$0xf] %vm747, %v713
      %779 = vst.msk [vmem:[%s223 + $0x7c] sm:$0xf] %vm747, %v714
      %s780 = smul.u32 32, %s18
      %p781 = scmp.lt.s32.totalorder %s780, 63
      %s782 = scalar_select %p781, %s780, 63
      %p783 = scmp.lt.s32.totalorder %s19, 0
      %s784 = scalar_select %p783, %s19, 0
      %s785 = sadd.s32 %s784, %s782
      %s786 = smul.addr %s785, 4
      %s787 = scalar_lea.vmem %s3, %s786
      // Predicated region
      $region33: #{bottleneck_fwd.3} parent=31 // pred_check
        %p788 = pneg %p124
      $region34: #{bottleneck_fwd.3} parent=31 // pred_check_branch
        %790 = sbr.rel (%p788) target = $region36
      $region35: #{bottleneck_fwd.3} parent=31 // pred_region
        %s791 = smul.u32 32, %s18
      $region36: #{bottleneck_fwd.3} parent=31 // pred_fallthru
        _
    $region32: #{bottleneck_fwd.3} parent=5 // pred_fallthru
      _
    %p792 = scmp.le.s32.totalorder 2, %s9
    // Predicated region
    $region37: #{bottleneck_fwd.3} parent=5 // pred_check
      %p793 = pneg %p792
    $region38: #{bottleneck_fwd.3} parent=5 // pred_check_branch
      %795 = sbr.rel (%p793) target = $region40
    $region39: #{bottleneck_fwd.3} parent=5 // pred_region
      %s796 = ssub.s32 %s9, 2
      // Predicated region
      $region41: #{bottleneck_fwd.3} parent=39 // pred_check
        %p797 = pneg %p130
      $region42: #{bottleneck_fwd.3} parent=39 // pred_check_branch
        %799 = sbr.rel (%p797) target = $region44
      $region43: #{bottleneck_fwd.3} parent=39 // pred_region
        %s800 = smul.u32 32, %s20
        %p801 = scmp.lt.s32.totalorder %s800, 63
        %s802 = scalar_select %p801, %s800, 63
        %p803 = scmp.lt.s32.totalorder %s21, 0
        %s804 = scalar_select %p803, %s21, 0
        %s805 = sadd.s32 %s804, %s802
        %s806 = smul.addr %s805, 4
        %s807 = scalar_lea.vmem %s3, %s806
      $region44: #{bottleneck_fwd.3} parent=39 // pred_fallthru
        _
    $region40: #{bottleneck_fwd.3} parent=5 // pred_fallthru
      _
  $region6: #{bottleneck_fwd.3} parent=0 // loop_footer
    %s13 = sadd.s32 1, %s9
  $region7: #{bottleneck_fwd.3} parent=0 // loop_footer_branch
    %8 = sbr.rel target = $region3
  $region8: #{bottleneck_fwd.3} parent=0 // loop_exit
    _

// kernel: bottleneck_fwd.5
$region0: #{bottleneck_fwd.5}
  #allocation0 [shape = 'u32[]', space=smem, size = 0x4, offset = 0x4, fixed_abs, tag = 'smem constant byte address 0x4 - core index']
  #allocation1 [shape = 'u32[144,128]{1,0:T(1,128)}', space=vmem, size = 0x12000, scoped, tag = 'internal scratch']
  %s0 = inlined_call_operand.vmem [shape: bf16[512,16], index: 0, kind: input, shape index: {}]
  %s1 = inlined_call_operand.vmem [shape: bf16[16,64], index: 1, kind: input, shape index: {}]
  %s2 = inlined_call_operand.vmem [shape: f32[1,64], index: 2, kind: input, shape index: {}]
  %s3 = inlined_call_operand.vmem [shape: bf16[512,64], index: 3, kind: input, shape index: {}]
  %s4 = inlined_call_operand.hbm [shape: f32[512,64], index: 4, kind: output, shape index: {}]
  %s5 = sld [smem:[#allocation0]]
  $region49: #{bottleneck_fwd.5} parent=0
    _
  %s7 = ssub.s32 1, %s5
  %s8 = scalar_select 0, %s7, %s5
  $region1: #{bottleneck_fwd.5} parent=0
    #allocation2 [shape = 'u8[262144]{0}', space=vmem, size = 0x40000, scoped, tag = 'output window, operand 0']
    #allocation3 [shape = 's32[2]{0}', space=sflag, size = 0x8, scoped, tag = 'scoped memory for bottleneck_fwd.5']
    %9 = vsyncpa [#allocation3], 0
    %s10 = scalar_lea.sflag [#allocation3], 1
    %11 = vsyncpa %s10, 0
    loop: start=0, step=1, limit=4
    $region2: #{bottleneck_fwd.5} parent=1 // loop_pre_header
      _
    $region3: #{bottleneck_fwd.5} parent=1 // loop_header
      %s13 = sphi 0, %s17
      %p14 = scmp.ge.s32.totalorder %s13, 4
      %s20 = sphi 0, %s32
      %s21 = sphi 0, %s28
      %s22 = sphi 0, %s20
      %s23 = sphi 0, %s21
      %s24 = sphi 0, %s22
      %s25 = sphi 0, %s23
      %s35 = sphi 0, %s37
      %s38 = sphi 0, %s35
      %s39 = sphi 0, %s38
      %s55 = sphi 0, %s39
      %s61 = sphi 0, %s63
      %s64 = sphi 0, %s61
      %s65 = sphi 0, %s64
      %s81 = sphi 0, %s65
      %s87 = sphi 0, %s89
      %s90 = sphi 0, %s87
      %s91 = sphi 0, %s90
      %s107 = sphi 0, %s91
      %s115 = sphi 0, %s117
      %s118 = sphi 0, %s115
      %s119 = sphi 0, %s118
      %s135 = sphi 0, %s119
      %s143 = sphi 0, %s145
      %s146 = sphi 0, %s143
      %s147 = sphi 0, %s146
      %s163 = sphi 0, %s147
    $region4: #{bottleneck_fwd.5} parent=1 // loop_header_branch
      %16 = sbr.rel (%p14) target = $region8
    $region5: #{bottleneck_fwd.5} parent=1 // loop_body
      %s18 = ssub.s32 %s13, 1
      %s19 = ssub.s32 %s13, 2
      %s26 = sadd.s32 1, %s21
      %p27 = scmp.ge.s32.totalorder %s26, 1
      %s28 = scalar_select %p27, 0, %s26
      %s29 = sadd.s32 1, %s20
      %s30 = scalar_select %p27, %s29, %s20
      %p31 = scmp.ge.s32.totalorder %s30, 2
      %s32 = scalar_select %p31, 0, %s30
      %s33 = ssub.s32 %s20, %s32
      %p34 = scmp.eq.s32.totalorder %s33, 0
      %s36 = sadd.s32 %s35, 1
      %s37 = scalar_select %p34, %s35, %s36
      %p40 = pneg %p34
      %p41 = scmp.eq.s32.totalorder %s13, 1
      %p42 = por %p40, %p41
      %p43 = scmp.ne.s32.totalorder %s35, %s38
      %p44 = scmp.eq.s32.totalorder %s13, 0
      %p45 = por %p43, %p44
      %p46 = scmp.ne.s32.totalorder %s35, %s38
      %p47 = scmp.eq.s32.totalorder %s18, 1
      %p48 = por %p46, %p47
      %p49 = scmp.ne.s32.totalorder %s38, %s39
      %p50 = scmp.eq.s32.totalorder %s18, 0
      %p51 = por %p49, %p50
      %p52 = scmp.ne.s32.totalorder %s38, %s39
      %p53 = scmp.eq.s32.totalorder %s19, 1
      %p54 = por %p52, %p53
      %p56 = scmp.ne.s32.totalorder %s39, %s55
      %p57 = scmp.eq.s32.totalorder %s19, 0
      %p58 = por %p56, %p57
      %s59 = ssub.s32 %s21, %s28
      %p60 = scmp.eq.s32.totalorder %s59, 0
      %s62 = sadd.s32 %s61, 1
      %s63 = scalar_select %p60, %s61, %s62
      %p66 = pneg %p60
      %p67 = scmp.eq.s32.totalorder %s13, 1
      %p68 = por %p66, %p67
      %p69 = scmp.ne.s32.totalorder %s61, %s64
      %p70 = scmp.eq.s32.totalorder %s13, 0
      %p71 = por %p69, %p70
      %p72 = scmp.ne.s32.totalorder %s61, %s64
      %p73 = scmp.eq.s32.totalorder %s18, 1
      %p74 = por %p72, %p73
      %p75 = scmp.ne.s32.totalorder %s64, %s65
      %p76 = scmp.eq.s32.totalorder %s18, 0
      %p77 = por %p75, %p76
      %p78 = scmp.ne.s32.totalorder %s64, %s65
      %p79 = scmp.eq.s32.totalorder %s19, 1
      %p80 = por %p78, %p79
      %p82 = scmp.ne.s32.totalorder %s65, %s81
      %p83 = scmp.eq.s32.totalorder %s19, 0
      %p84 = por %p82, %p83
      %s85 = ssub.s32 %s21, %s28
      %p86 = scmp.eq.s32.totalorder %s85, 0
      %s88 = sadd.s32 %s87, 1
      %s89 = scalar_select %p86, %s87, %s88
      %p92 = pneg %p86
      %p93 = scmp.eq.s32.totalorder %s13, 1
      %p94 = por %p92, %p93
      %p95 = scmp.ne.s32.totalorder %s87, %s90
      %p96 = scmp.eq.s32.totalorder %s13, 0
      %p97 = por %p95, %p96
      %p98 = scmp.ne.s32.totalorder %s87, %s90
      %p99 = scmp.eq.s32.totalorder %s18, 1
      %p100 = por %p98, %p99
      %p101 = scmp.ne.s32.totalorder %s90, %s91
      %p102 = scmp.eq.s32.totalorder %s18, 0
      %p103 = por %p101, %p102
      %p104 = scmp.ne.s32.totalorder %s90, %s91
      %p105 = scmp.eq.s32.totalorder %s19, 1
      %p106 = por %p104, %p105
      %p108 = scmp.ne.s32.totalorder %s91, %s107
      %p109 = scmp.eq.s32.totalorder %s19, 0
      %p110 = por %p108, %p109
      %s111 = ssub.s32 %s20, %s32
      %s112 = ssub.s32 %s21, %s28
      %s113 = sor.u32 %s111, %s112
      %p114 = scmp.eq.s32.totalorder %s113, 0
      %s116 = sadd.s32 %s115, 1
      %s117 = scalar_select %p114, %s115, %s116
      %p120 = pneg %p114
      %p121 = scmp.eq.s32.totalorder %s13, 1
      %p122 = por %p120, %p121
      %p123 = scmp.ne.s32.totalorder %s115, %s118
      %p124 = scmp.eq.s32.totalorder %s13, 0
      %p125 = por %p123, %p124
      %p126 = scmp.ne.s32.totalorder %s115, %s118
      %p127 = scmp.eq.s32.totalorder %s18, 1
      %p128 = por %p126, %p127
      %p129 = scmp.ne.s32.totalorder %s118, %s119
      %p130 = scmp.eq.s32.totalorder %s18, 0
      %p131 = por %p129, %p130
      %p132 = scmp.ne.s32.totalorder %s118, %s119
      %p133 = scmp.eq.s32.totalorder %s19, 1
      %p134 = por %p132, %p133
      %p136 = scmp.ne.s32.totalorder %s119, %s135
      %p137 = scmp.eq.s32.totalorder %s19, 0
      %p138 = por %p136, %p137
      %s139 = ssub.s32 %s20, %s32
      %s140 = ssub.s32 %s21, %s28
      %s141 = sor.u32 %s139, %s140
      %p142 = scmp.eq.s32.totalorder %s141, 0
      %s144 = sadd.s32 %s143, 1
      %s145 = scalar_select %p142, %s143, %s144
      %p148 = pneg %p142
      %p149 = scmp.eq.s32.totalorder %s13, 1
      %p150 = por %p148, %p149
      %p151 = scmp.ne.s32.totalorder %s143, %s146
      %p152 = scmp.eq.s32.totalorder %s13, 0
      %p153 = por %p151, %p152
      %p154 = scmp.ne.s32.totalorder %s143, %s146
      %p155 = scmp.eq.s32.totalorder %s18, 1
      %p156 = por %p154, %p155
      %p157 = scmp.ne.s32.totalorder %s146, %s147
      %p158 = scmp.eq.s32.totalorder %s18, 0
      %p159 = por %p157, %p158
      %p160 = scmp.ne.s32.totalorder %s146, %s147
      %p161 = scmp.eq.s32.totalorder %s19, 1
      %p162 = por %p160, %p161
      %p164 = scmp.ne.s32.totalorder %s147, %s163
      %p165 = scmp.eq.s32.totalorder %s19, 0
      %p166 = por %p164, %p165
      %p167 = scmp.le.s32.totalorder 1, %s13
      %p168 = scmp.lt.s32.totalorder %s13, 3
      %p169 = pnand %p167, %p168
      %p170 = pneg %p169
      // Predicated region
      $region9: #{bottleneck_fwd.5} parent=5 // pred_check
        _
      $region10: #{bottleneck_fwd.5} parent=5 // pred_check_branch
        %172 = sbr.rel (%p169) target = $region12
      $region11: #{bottleneck_fwd.5} parent=5 // pred_region
        %s173 = ssub.s32 %s13, 1
        // Predicated region
        $region13: #{bottleneck_fwd.5} parent=11 // pred_check
          %p174 = pneg %p77
        $region14: #{bottleneck_fwd.5} parent=11 // pred_check_branch
          %176 = sbr.rel (%p174) target = $region16
        $region15: #{bottleneck_fwd.5} parent=11 // pred_region
          %p177 = scmp.lt.s32.totalorder %s23, 0
          %s178 = scalar_select %p177, %s23, 0
          %s179 = smul.addr %s178, 4
          %s180 = scalar_lea.vmem %s1, %s179
        $region16: #{bottleneck_fwd.5} parent=11 // pred_fallthru
          _
        // Predicated region
        $region17: #{bottleneck_fwd.5} parent=11 // pred_check
          %p181 = pneg %p103
        $region18: #{bottleneck_fwd.5} parent=11 // pred_check_branch
          %183 = sbr.rel (%p181) target = $region20
        $region19: #{bottleneck_fwd.5} parent=11 // pred_region
          %p184 = scmp.lt.s32.totalorder %s23, 0
          %s185 = scalar_select %p184, %s23, 0
          %s186 = scalar_lea.vmem %s2, %s185
        $region20: #{bottleneck_fwd.5} parent=11 // pred_fallthru
          _
      $region12: #{bottleneck_fwd.5} parent=5 // pred_fallthru
        _
      %p187 = scmp.lt.s32.totalorder %s13, 2
      // Predicated region
      $region21: #{bottleneck_fwd.5} parent=5 // pred_check
        %p188 = pneg %p187
      $region22: #{bottleneck_fwd.5} parent=5 // pred_check_branch
        %190 = sbr.rel (%p188) target = $region24
      $region23: #{bottleneck_fwd.5} parent=5 // pred_region
        // Predicated region
        $region25: #{bottleneck_fwd.5} parent=23 // pred_check
          %p191 = pneg %p45
        $region26: #{bottleneck_fwd.5} parent=23 // pred_check_branch
          %193 = sbr.rel (%p191) target = $region28
        $region27: #{bottleneck_fwd.5} parent=23 // pred_region
          %s194 = smul.u32 32, %s20
          %p195 = scmp.lt.s32.totalorder %s194, 63
          %s196 = scalar_select %p195, %s194, 63
          %s197 = smul.addr %s196, 4
          %s198 = scalar_lea.vmem %s0, %s197
          %s199 = smul.u32 32, %s20
        $region28: #{bottleneck_fwd.5} parent=23 // pred_fallthru
          _
        // Predicated region
        $region29: #{bottleneck_fwd.5} parent=23 // pred_check
          %p200 = pneg %p125
        $region30: #{bottleneck_fwd.5} parent=23 // pred_check_branch
          %202 = sbr.rel (%p200) target = $region32
        $region31: #{bottleneck_fwd.5} parent=23 // pred_region
          %s203 = smul.u32 32, %s20
          %p204 = scmp.lt.s32.totalorder %s203, 63
          %s205 = scalar_select %p204, %s203, 63
          %p206 = scmp.lt.s32.totalorder %s21, 0
          %s207 = scalar_select %p206, %s21, 0
          %s208 = sadd.s32 %s207, %s205
          %s209 = smul.addr %s208, 4
          %s210 = scalar_lea.vmem %s3, %s209
          %s211 = smul.u32 32, %s20
        $region32: #{bottleneck_fwd.5} parent=23 // pred_fallthru
          _
      $region24: #{bottleneck_fwd.5} parent=5 // pred_fallthru
        _
      %p212 = scmp.le.s32.totalorder 1, %s13
      %p213 = scmp.lt.s32.totalorder %s13, 3
      %p214 = pnand %p212, %p213
      %p215 = pneg %p214
      // Predicated region
      $region33: #{bottleneck_fwd.5} parent=5 // pred_check
        _
      $region34: #{bottleneck_fwd.5} parent=5 // pred_check_branch
        %217 = sbr.rel (%p214) target = $region36
      $region35: #{bottleneck_fwd.5} parent=5 // pred_region
        %s218 = ssub.s32 %s13, 1
        %s219 = smul.u32 32, %s22
        %p220 = scmp.lt.s32.totalorder %s219, 63
        %s221 = scalar_select %p220, %s219, 63
        %s222 = smul.addr %s221, 4
        %s223 = scalar_lea.vmem %s0, %s222
        %p224 = pneg %p51
        %p225 = pneg %p48
        %p226 = scmp.lt.s32.totalorder %s23, 0
        %s227 = scalar_select %p226, %s23, 0
        %s228 = smul.addr %s227, 4
        %s229 = scalar_lea.vmem %s1, %s228
        %p230 = pneg %p77
        %p231 = pneg %p74
        %p232 = scmp.lt.s32.totalorder %s23, 0
        %s233 = scalar_select %p232, %s23, 0
        %s234 = scalar_lea.vmem %s2, %s233
        %p235 = pneg %p103
        %p236 = pneg %p100
        %s237 = smul.u32 32, %s22
        %p238 = scmp.lt.s32.totalorder %s237, 63
        %s239 = scalar_select %p238, %s237, 63
        %p240 = scmp.lt.s32.totalorder %s23, 0
        %s241 = scalar_select %p240, %s23, 0
        %s242 = sadd.s32 %s241, %s239
        %s243 = smul.addr %s242, 4
        %s244 = scalar_lea.vmem %s3, %s243
        %p245 = pneg %p131
        %p246 = pneg %p128
        %p247 = pneg %p159
        %p248 = pneg %p156
        %s249 = sand.u32 %s146, 1
        %s250 = scalar_lea.sflag [#allocation3], %s249
        %s251 = sand.u32 %s146, 1
        %s252 = smul.addr %s251, 256
        %s253 = scalar_lea.vmem [#allocation2], %s252
        %s254 = smul.u32 32, %s22
        %p255 = scmp.lt.s32.totalorder %s254, 63
        %s256 = scalar_select %p255, %s254, 63
        %s257 = smul.addr %s256, 4
        %s258 = scalar_lea.vmem %s0, %s257
        %s259 = smul.u32 32, %s22
        %p260 = scmp.lt.s32.totalorder %s23, 0
        %s261 = scalar_select %p260, %s23, 0
        %s262 = smul.addr %s261, 4
        %s263 = scalar_lea.vmem %s1, %s262
        %p264 = scmp.lt.s32.totalorder %s23, 0
        %s265 = scalar_select %p264, %s23, 0
        %s266 = scalar_lea.vmem %s2, %s265
        %s267 = smul.u32 32, %s22
        %p268 = scmp.lt.s32.totalorder %s267, 63
        %s269 = scalar_select %p268, %s267, 63
        %p270 = scmp.lt.s32.totalorder %s23, 0
        %s271 = scalar_select %p270, %s23, 0
        %s272 = sadd.s32 %s271, %s269
        %s273 = smul.addr %s272, 4
        %s274 = scalar_lea.vmem %s3, %s273
        %s275 = smul.u32 32, %s22
        %s276 = smul.u32 32, %s22
        %v278 = vld [vmem:[%s258] sm:$0xf]
        %v279 = vld [vmem:[%s258 + $0x4] sm:$0xf]
        %v280 = vld [vmem:[%s258 + $0x8] sm:$0xf]
        %v281 = vld [vmem:[%s258 + $0xc] sm:$0xf]
        %v282 = vld [vmem:[%s258 + $0x10] sm:$0xf]
        %v283 = vld [vmem:[%s258 + $0x14] sm:$0xf]
        %v284 = vld [vmem:[%s258 + $0x18] sm:$0xf]
        %v285 = vld [vmem:[%s258 + $0x1c] sm:$0xf]
        %v286 = vld [vmem:[%s258 + $0x20] sm:$0xf]
        %v287 = vld [vmem:[%s258 + $0x24] sm:$0xf]
        %v288 = vld [vmem:[%s258 + $0x28] sm:$0xf]
        %v289 = vld [vmem:[%s258 + $0x2c] sm:$0xf]
        %v290 = vld [vmem:[%s258 + $0x30] sm:$0xf]
        %v291 = vld [vmem:[%s258 + $0x34] sm:$0xf]
        %v292 = vld [vmem:[%s258 + $0x38] sm:$0xf]
        %v293 = vld [vmem:[%s258 + $0x3c] sm:$0xf]
        %v294 = vld [vmem:[%s258 + $0x40] sm:$0xf]
        %v295 = vld [vmem:[%s258 + $0x44] sm:$0xf]
        %v296 = vld [vmem:[%s258 + $0x48] sm:$0xf]
        %v297 = vld [vmem:[%s258 + $0x4c] sm:$0xf]
        %v298 = vld [vmem:[%s258 + $0x50] sm:$0xf]
        %v299 = vld [vmem:[%s258 + $0x54] sm:$0xf]
        %v300 = vld [vmem:[%s258 + $0x58] sm:$0xf]
        %v301 = vld [vmem:[%s258 + $0x5c] sm:$0xf]
        %v302 = vld [vmem:[%s258 + $0x60] sm:$0xf]
        %v303 = vld [vmem:[%s258 + $0x64] sm:$0xf]
        %v304 = vld [vmem:[%s258 + $0x68] sm:$0xf]
        %v305 = vld [vmem:[%s258 + $0x6c] sm:$0xf]
        %v306 = vld [vmem:[%s258 + $0x70] sm:$0xf]
        %v307 = vld [vmem:[%s258 + $0x74] sm:$0xf]
        %v308 = vld [vmem:[%s258 + $0x78] sm:$0xf]
        %v309 = vld [vmem:[%s258 + $0x7c] sm:$0xf]
        %v310 = vld [vmem:[%s263] sm:$0xf]
        %v311 = vld [vmem:[%s263 + $0x4] sm:$0xf]
        %v312 = vld [vmem:[%s266] sm:$0x1]
        %v314 = vlaneseq
        %v315 = vshrl.u32 %v314, 7
        %v316 = vsub.s32 0, %v315
        %v317 = vrot.slane %v312, %v316
        %v351 = vunpack.c.l.b16 %v278
        %v352 = vunpack.c.l.b16 %v279
        %v353 = vunpack.c.l.b16 %v280
        %v354 = vunpack.c.l.b16 %v281
        %v355 = vunpack.c.l.b16 %v282
        %v356 = vunpack.c.l.b16 %v283
        %v357 = vunpack.c.l.b16 %v284
        %v358 = vunpack.c.l.b16 %v285
        %v359 = vunpack.c.l.b16 %v286
        %v360 = vunpack.c.l.b16 %v287
        %v361 = vunpack.c.l.b16 %v288
        %v362 = vunpack.c.l.b16 %v289
        %v363 = vunpack.c.l.b16 %v290
        %v364 = vunpack.c.l.b16 %v291
        %v365 = vunpack.c.l.b16 %v292
        %v366 = vunpack.c.l.b16 %v293
        %v367 = vunpack.c.l.b16 %v294
        %v368 = vunpack.c.l.b16 %v295
        %v369 = vunpack.c.l.b16 %v296
        %v370 = vunpack.c.l.b16 %v297
        %v371 = vunpack.c.l.b16 %v298
        %v372 = vunpack.c.l.b16 %v299
        %v373 = vunpack.c.l.b16 %v300
        %v374 = vunpack.c.l.b16 %v301
        %v375 = vunpack.c.l.b16 %v302
        %v376 = vunpack.c.l.b16 %v303
        %v377 = vunpack.c.l.b16 %v304
        %v378 = vunpack.c.l.b16 %v305
        %v379 = vunpack.c.l.b16 %v306
        %v380 = vunpack.c.l.b16 %v307
        %v381 = vunpack.c.l.b16 %v308
        %v382 = vunpack.c.l.b16 %v309
        %v383 = vpack.c.b16 %v352, %v351
        %v384 = vpack.c.b16 %v354, %v353
        %v385 = vpack.c.b16 %v356, %v355
        %v386 = vpack.c.b16 %v358, %v357
        %v387 = vpack.c.b16 %v360, %v359
        %v388 = vpack.c.b16 %v362, %v361
        %v389 = vpack.c.b16 %v364, %v363
        %v390 = vpack.c.b16 %v366, %v365
        %v391 = vpack.c.b16 %v368, %v367
        %v392 = vpack.c.b16 %v370, %v369
        %v393 = vpack.c.b16 %v372, %v371
        %v394 = vpack.c.b16 %v374, %v373
        %v395 = vpack.c.b16 %v376, %v375
        %v396 = vpack.c.b16 %v378, %v377
        %v397 = vpack.c.b16 %v380, %v379
        %v398 = vpack.c.b16 %v382, %v381
        %v401 = vunpack.c.l.b16 %v310
        %v402 = vunpack.c.l.b16 %v311
        %v403 = vpack.c.b16 %v402, %v401
        %vm405 = vcmask 130048
        %v407 = vsel %vm405, %v383, 0
        %v410 = vsel %vm405, %v384, 0
        %v413 = vsel %vm405, %v385, 0
        %v416 = vsel %vm405, %v386, 0
        %v419 = vsel %vm405, %v387, 0
        %v422 = vsel %vm405, %v388, 0
        %v425 = vsel %vm405, %v389, 0
        %v428 = vsel %vm405, %v390, 0
        %v431 = vsel %vm405, %v391, 0
        %v434 = vsel %vm405, %v392, 0
        %v437 = vsel %vm405, %v393, 0
        %v440 = vsel %vm405, %v394, 0
        %v443 = vsel %vm405, %v395, 0
        %v446 = vsel %vm405, %v396, 0
        %v449 = vsel %vm405, %v397, 0
        %v452 = vsel %vm405, %v398, 0
        %454 = vmatprep.subr.bf16.mxu0 0
        %455 = vmatpush1.bf16.msra.mxu0 %v403
        %456 = vmatprep.subr.bf16.mxu0 0
        %457 = vmatpush1.bf16.msra.mxu0 0
        %458 = vmatprep.subr.bf16.mxu0 0
        %459 = vmatpush1.bf16.msra.mxu0 0
        %460 = vmatprep.subr.bf16.mxu0 0
        %461 = vmatpush1.bf16.msra.mxu0 0
        %462 = vmatprep.subr.bf16.mxu0 0
        %463 = vmatpush1.bf16.msra.mxu0 0
        %464 = vmatprep.subr.bf16.mxu0 0
        %465 = vmatpush1.bf16.msra.mxu0 0
        %466 = vmatprep.subr.bf16.mxu0 0
        %467 = vmatpush1.bf16.msra.mxu0 0
        %468 = vmatprep.subr.bf16.mxu0 0
        %469 = vmatpush1.bf16.msra.mxu0 0
        %470 = vmatprep.subr.bf16.mxu0 0
        %471 = vmatpush1.bf16.msra.mxu0 0
        %472 = vmatprep.subr.bf16.mxu0 0
        %473 = vmatpush1.bf16.msra.mxu0 0
        %474 = vmatprep.subr.bf16.mxu0 0
        %475 = vmatpush1.bf16.msra.mxu0 0
        %476 = vmatprep.subr.bf16.mxu0 0
        %477 = vmatpush1.bf16.msra.mxu0 0
        %478 = vmatprep.subr.bf16.mxu0 0
        %479 = vmatpush1.bf16.msra.mxu0 0
        %480 = vmatprep.subr.bf16.mxu0 0
        %481 = vmatpush1.bf16.msra.mxu0 0
        %482 = vmatprep.subr.bf16.mxu0 0
        %483 = vmatpush1.bf16.msra.mxu0 0
        %484 = vmatprep.subr.bf16.mxu0 0
        %485 = vmatpush1.bf16.msra.mxu0 0
        %486 = vmatprep.mubr.bf16.mxu0 0
        %487 = vmatmul.mubr.bf16.gmra.mrb[0].mxu0 %v407
        %v488 = vpop.f32.mrb[0].mxu0
        %v489 = vadd.f32 %v317, %v488
        %v490 = vpop.f32.mrb[0].mxu0
        %v491 = vpop.f32.mrb[0].mxu0
        %v492 = vadd.f32 %v317, %v491
        %v493 = vpop.f32.mrb[0].mxu0
        %494 = vmatprep.mubr.bf16.mxu0 0
        %495 = vmatmul.mubr.bf16.gmra.mrb[0].mxu0 %v410
        %v496 = vpop.f32.mrb[0].mxu0
        %v497 = vadd.f32 %v317, %v496
        %v498 = vpop.f32.mrb[0].mxu0
        %v499 = vpop.f32.mrb[0].mxu0
        %v500 = vadd.f32 %v317, %v499
        %v501 = vpop.f32.mrb[0].mxu0
        %502 = vmatprep.mubr.bf16.mxu0 0
        %503 = vmatmul.mubr.bf16.gmra.mrb[0].mxu0 %v413
        %v504 = vpop.f32.mrb[0].mxu0
        %v505 = vadd.f32 %v317, %v504
        %v506 = vpop.f32.mrb[0].mxu0
        %v507 = vpop.f32.mrb[0].mxu0
        %v508 = vadd.f32 %v317, %v507
        %v509 = vpop.f32.mrb[0].mxu0
        %510 = vmatprep.mubr.bf16.mxu0 0
        %511 = vmatmul.mubr.bf16.gmra.mrb[0].mxu0 %v416
        %v512 = vpop.f32.mrb[0].mxu0
        %v513 = vadd.f32 %v317, %v512
        %v514 = vpop.f32.mrb[0].mxu0
        %v515 = vpop.f32.mrb[0].mxu0
        %v516 = vadd.f32 %v317, %v515
        %v517 = vpop.f32.mrb[0].mxu0
        %518 = vmatprep.mubr.bf16.mxu0 0
        %519 = vmatmul.mubr.bf16.gmra.mrb[0].mxu0 %v419
        %v520 = vpop.f32.mrb[0].mxu0
        %v521 = vadd.f32 %v317, %v520
        %v522 = vpop.f32.mrb[0].mxu0
        %v523 = vpop.f32.mrb[0].mxu0
        %v524 = vadd.f32 %v317, %v523
        %v525 = vpop.f32.mrb[0].mxu0
        %526 = vmatprep.mubr.bf16.mxu0 0
        %527 = vmatmul.mubr.bf16.gmra.mrb[0].mxu0 %v422
        %v528 = vpop.f32.mrb[0].mxu0
        %v529 = vadd.f32 %v317, %v528
        %v530 = vpop.f32.mrb[0].mxu0
        %v531 = vpop.f32.mrb[0].mxu0
        %v532 = vadd.f32 %v317, %v531
        %v533 = vpop.f32.mrb[0].mxu0
        %534 = vmatprep.mubr.bf16.mxu0 0
        %535 = vmatmul.mubr.bf16.gmra.mrb[0].mxu0 %v425
        %v536 = vpop.f32.mrb[0].mxu0
        %v537 = vadd.f32 %v317, %v536
        %v538 = vpop.f32.mrb[0].mxu0
        %v539 = vpop.f32.mrb[0].mxu0
        %v540 = vadd.f32 %v317, %v539
        %v541 = vpop.f32.mrb[0].mxu0
        %542 = vmatprep.mubr.bf16.mxu0 0
        %543 = vmatmul.mubr.bf16.gmra.mrb[0].mxu0 %v428
        %v544 = vpop.f32.mrb[0].mxu0
        %v545 = vadd.f32 %v317, %v544
        %v546 = vpop.f32.mrb[0].mxu0
        %v547 = vpop.f32.mrb[0].mxu0
        %v548 = vadd.f32 %v317, %v547
        %v549 = vpop.f32.mrb[0].mxu0
        %550 = vmatprep.mubr.bf16.mxu0 0
        %551 = vmatmul.mubr.bf16.gmra.mrb[0].mxu0 %v431
        %v552 = vpop.f32.mrb[0].mxu0
        %v553 = vadd.f32 %v317, %v552
        %v554 = vpop.f32.mrb[0].mxu0
        %v555 = vpop.f32.mrb[0].mxu0
        %v556 = vadd.f32 %v317, %v555
        %v557 = vpop.f32.mrb[0].mxu0
        %558 = vmatprep.mubr.bf16.mxu0 0
        %559 = vmatmul.mubr.bf16.gmra.mrb[0].mxu0 %v434
        %v560 = vpop.f32.mrb[0].mxu0
        %v561 = vadd.f32 %v317, %v560
        %v562 = vpop.f32.mrb[0].mxu0
        %v563 = vpop.f32.mrb[0].mxu0
        %v564 = vadd.f32 %v317, %v563
        %v565 = vpop.f32.mrb[0].mxu0
        %566 = vmatprep.mubr.bf16.mxu0 0
        %567 = vmatmul.mubr.bf16.gmra.mrb[0].mxu0 %v437
        %v568 = vpop.f32.mrb[0].mxu0
        %v569 = vadd.f32 %v317, %v568
        %v570 = vpop.f32.mrb[0].mxu0
        %v571 = vpop.f32.mrb[0].mxu0
        %v572 = vadd.f32 %v317, %v571
        %v573 = vpop.f32.mrb[0].mxu0
        %574 = vmatprep.mubr.bf16.mxu0 0
        %575 = vmatmul.mubr.bf16.gmra.mrb[0].mxu0 %v440
        %v576 = vpop.f32.mrb[0].mxu0
        %v577 = vadd.f32 %v317, %v576
        %v578 = vpop.f32.mrb[0].mxu0
        %v579 = vpop.f32.mrb[0].mxu0
        %v580 = vadd.f32 %v317, %v579
        %v581 = vpop.f32.mrb[0].mxu0
        %582 = vmatprep.mubr.bf16.mxu0 0
        %583 = vmatmul.mubr.bf16.gmra.mrb[0].mxu0 %v443
        %v584 = vpop.f32.mrb[0].mxu0
        %v585 = vadd.f32 %v317, %v584
        %v586 = vpop.f32.mrb[0].mxu0
        %v587 = vpop.f32.mrb[0].mxu0
        %v588 = vadd.f32 %v317, %v587
        %v589 = vpop.f32.mrb[0].mxu0
        %590 = vmatprep.mubr.bf16.mxu0 0
        %591 = vmatmul.mubr.bf16.gmra.mrb[0].mxu0 %v446
        %v592 = vpop.f32.mrb[0].mxu0
        %v593 = vadd.f32 %v317, %v592
        %v594 = vpop.f32.mrb[0].mxu0
        %v595 = vpop.f32.mrb[0].mxu0
        %v596 = vadd.f32 %v317, %v595
        %v597 = vpop.f32.mrb[0].mxu0
        %598 = vmatprep.mubr.bf16.mxu0 0
        %599 = vmatmul.mubr.bf16.gmra.mrb[0].mxu0 %v449
        %v600 = vpop.f32.mrb[0].mxu0
        %v601 = vadd.f32 %v317, %v600
        %v602 = vpop.f32.mrb[0].mxu0
        %v603 = vpop.f32.mrb[0].mxu0
        %v604 = vadd.f32 %v317, %v603
        %v605 = vpop.f32.mrb[0].mxu0
        %606 = vmatprep.mubr.bf16.mxu0 0
        %607 = vmatmul.mubr.bf16.gmra.mrb[0].mxu0 %v452
        %v608 = vpop.f32.mrb[0].mxu0
        %v609 = vadd.f32 %v317, %v608
        %v610 = vpop.f32.mrb[0].mxu0
        %v611 = vpop.f32.mrb[0].mxu0
        %v612 = vadd.f32 %v317, %v611
        %v613 = vpop.f32.mrb[0].mxu0
        %614 = vdwg.mxu0
        %v615 = vld [vmem:[%s274] sm:$0xf]
        %v616 = vld [vmem:[%s274 + $0x4] sm:$0xf]
        %v617 = vld [vmem:[%s274 + $0x8] sm:$0xf]
        %v618 = vld [vmem:[%s274 + $0xc] sm:$0xf]
        %v619 = vld [vmem:[%s274 + $0x10] sm:$0xf]
        %v620 = vld [vmem:[%s274 + $0x14] sm:$0xf]
        %v621 = vld [vmem:[%s274 + $0x18] sm:$0xf]
        %v622 = vld [vmem:[%s274 + $0x1c] sm:$0xf]
        %v623 = vld [vmem:[%s274 + $0x20] sm:$0xf]
        %v624 = vld [vmem:[%s274 + $0x24] sm:$0xf]
        %v625 = vld [vmem:[%s274 + $0x28] sm:$0xf]
        %v626 = vld [vmem:[%s274 + $0x2c] sm:$0xf]
        %v627 = vld [vmem:[%s274 + $0x30] sm:$0xf]
        %v628 = vld [vmem:[%s274 + $0x34] sm:$0xf]
        %v629 = vld [vmem:[%s274 + $0x38] sm:$0xf]
        %v630 = vld [vmem:[%s274 + $0x3c] sm:$0xf]
        %v631 = vld [vmem:[%s274 + $0x40] sm:$0xf]
        %v632 = vld [vmem:[%s274 + $0x44] sm:$0xf]
        %v633 = vld [vmem:[%s274 + $0x48] sm:$0xf]
        %v634 = vld [vmem:[%s274 + $0x4c] sm:$0xf]
        %v635 = vld [vmem:[%s274 + $0x50] sm:$0xf]
        %v636 = vld [vmem:[%s274 + $0x54] sm:$0xf]
        %v637 = vld [vmem:[%s274 + $0x58] sm:$0xf]
        %v638 = vld [vmem:[%s274 + $0x5c] sm:$0xf]
        %v639 = vld [vmem:[%s274 + $0x60] sm:$0xf]
        %v640 = vld [vmem:[%s274 + $0x64] sm:$0xf]
        %v641 = vld [vmem:[%s274 + $0x68] sm:$0xf]
        %v642 = vld [vmem:[%s274 + $0x6c] sm:$0xf]
        %v643 = vld [vmem:[%s274 + $0x70] sm:$0xf]
        %v644 = vld [vmem:[%s274 + $0x74] sm:$0xf]
        %v645 = vld [vmem:[%s274 + $0x78] sm:$0xf]
        %v646 = vld [vmem:[%s274 + $0x7c] sm:$0xf]
        %v647 = vunpack.c.l.bf16 %v615
        %v648 = vunpack.c.l.bf16 %v616
        %v649 = vunpack.c.l.bf16 %v617
        %v650 = vunpack.c.l.bf16 %v618
        %v651 = vunpack.c.l.bf16 %v619
        %v652 = vunpack.c.l.bf16 %v620
        %v653 = vunpack.c.l.bf16 %v621
        %v654 = vunpack.c.l.bf16 %v622
        %v655 = vunpack.c.l.bf16 %v623
        %v656 = vunpack.c.l.bf16 %v624
        %v657 = vunpack.c.l.bf16 %v625
        %v658 = vunpack.c.l.bf16 %v626
        %v659 = vunpack.c.l.bf16 %v627
        %v660 = vunpack.c.l.bf16 %v628
        %v661 = vunpack.c.l.bf16 %v629
        %v662 = vunpack.c.l.bf16 %v630
        %v663 = vunpack.c.l.bf16 %v631
        %v664 = vunpack.c.l.bf16 %v632
        %v665 = vunpack.c.l.bf16 %v633
        %v666 = vunpack.c.l.bf16 %v634
        %v667 = vunpack.c.l.bf16 %v635
        %v668 = vunpack.c.l.bf16 %v636
        %v669 = vunpack.c.l.bf16 %v637
        %v670 = vunpack.c.l.bf16 %v638
        %v671 = vunpack.c.l.bf16 %v639
        %v672 = vunpack.c.l.bf16 %v640
        %v673 = vunpack.c.l.bf16 %v641
        %v674 = vunpack.c.l.bf16 %v642
        %v675 = vunpack.c.l.bf16 %v643
        %v676 = vunpack.c.l.bf16 %v644
        %v677 = vunpack.c.l.bf16 %v645
        %v678 = vunpack.c.l.bf16 %v646
        %v679 = vadd.f32 %v489, %v647
        %v680 = vadd.f32 %v492, %v648
        %v681 = vadd.f32 %v497, %v649
        %v682 = vadd.f32 %v500, %v650
        %v683 = vadd.f32 %v505, %v651
        %v684 = vadd.f32 %v508, %v652
        %v685 = vadd.f32 %v513, %v653
        %v686 = vadd.f32 %v516, %v654
        %v687 = vadd.f32 %v521, %v655
        %v688 = vadd.f32 %v524, %v656
        %v689 = vadd.f32 %v529, %v657
        %v690 = vadd.f32 %v532, %v658
        %v691 = vadd.f32 %v537, %v659
        %v692 = vadd.f32 %v540, %v660
        %v693 = vadd.f32 %v545, %v661
        %v694 = vadd.f32 %v548, %v662
        %v695 = vadd.f32 %v553, %v663
        %v696 = vadd.f32 %v556, %v664
        %v697 = vadd.f32 %v561, %v665
        %v698 = vadd.f32 %v564, %v666
        %v699 = vadd.f32 %v569, %v667
        %v700 = vadd.f32 %v572, %v668
        %v701 = vadd.f32 %v577, %v669
        %v702 = vadd.f32 %v580, %v670
        %v703 = vadd.f32 %v585, %v671
        %v704 = vadd.f32 %v588, %v672
        %v705 = vadd.f32 %v593, %v673
        %v706 = vadd.f32 %v596, %v674
        %v707 = vadd.f32 %v601, %v675
        %v708 = vadd.f32 %v604, %v676
        %v709 = vadd.f32 %v609, %v677
        %v710 = vadd.f32 %v612, %v678
        %v711 = vmax.f32 %v679, 0.0
        %v712 = vmax.f32 %v680, 0.0
        %v713 = vmax.f32 %v681, 0.0
        %v714 = vmax.f32 %v682, 0.0
        %v715 = vmax.f32 %v683, 0.0
        %v716 = vmax.f32 %v684, 0.0
        %v717 = vmax.f32 %v685, 0.0
        %v718 = vmax.f32 %v686, 0.0
        %v719 = vmax.f32 %v687, 0.0
        %v720 = vmax.f32 %v688, 0.0
        %v721 = vmax.f32 %v689, 0.0
        %v722 = vmax.f32 %v690, 0.0
        %v723 = vmax.f32 %v691, 0.0
        %v724 = vmax.f32 %v692, 0.0
        %v725 = vmax.f32 %v693, 0.0
        %v726 = vmax.f32 %v694, 0.0
        %v727 = vmax.f32 %v695, 0.0
        %v728 = vmax.f32 %v696, 0.0
        %v729 = vmax.f32 %v697, 0.0
        %v730 = vmax.f32 %v698, 0.0
        %v731 = vmax.f32 %v699, 0.0
        %v732 = vmax.f32 %v700, 0.0
        %v733 = vmax.f32 %v701, 0.0
        %v734 = vmax.f32 %v702, 0.0
        %v735 = vmax.f32 %v703, 0.0
        %v736 = vmax.f32 %v704, 0.0
        %v737 = vmax.f32 %v705, 0.0
        %v738 = vmax.f32 %v706, 0.0
        %v739 = vmax.f32 %v707, 0.0
        %v740 = vmax.f32 %v708, 0.0
        %v741 = vmax.f32 %v709, 0.0
        %v742 = vmax.f32 %v710, 0.0
        %vm743 = vcmask 523264
        %744 = vst.msk [vmem:[%s253] sm:$0xff] %vm743, %v711
        %745 = vst.msk [vmem:[%s253 + $0x8] sm:$0xff] %vm743, %v712
        %746 = vst.msk [vmem:[%s253 + $0x10] sm:$0xff] %vm743, %v713
        %747 = vst.msk [vmem:[%s253 + $0x18] sm:$0xff] %vm743, %v714
        %748 = vst.msk [vmem:[%s253 + $0x20] sm:$0xff] %vm743, %v715
        %749 = vst.msk [vmem:[%s253 + $0x28] sm:$0xff] %vm743, %v716
        %750 = vst.msk [vmem:[%s253 + $0x30] sm:$0xff] %vm743, %v717
        %751 = vst.msk [vmem:[%s253 + $0x38] sm:$0xff] %vm743, %v718
        %752 = vst.msk [vmem:[%s253 + $0x40] sm:$0xff] %vm743, %v719
        %753 = vst.msk [vmem:[%s253 + $0x48] sm:$0xff] %vm743, %v720
        %754 = vst.msk [vmem:[%s253 + $0x50] sm:$0xff] %vm743, %v721
        %755 = vst.msk [vmem:[%s253 + $0x58] sm:$0xff] %vm743, %v722
        %756 = vst.msk [vmem:[%s253 + $0x60] sm:$0xff] %vm743, %v723
        %757 = vst.msk [vmem:[%s253 + $0x68] sm:$0xff] %vm743, %v724
        %758 = vst.msk [vmem:[%s253 + $0x70] sm:$0xff] %vm743, %v725
        %759 = vst.msk [vmem:[%s253 + $0x78] sm:$0xff] %vm743, %v726
        %760 = vst.msk [vmem:[%s253 + $0x80] sm:$0xff] %vm743, %v727
        %761 = vst.msk [vmem:[%s253 + $0x88] sm:$0xff] %vm743, %v728
        %762 = vst.msk [vmem:[%s253 + $0x90] sm:$0xff] %vm743, %v729
        %763 = vst.msk [vmem:[%s253 + $0x98] sm:$0xff] %vm743, %v730
        %764 = vst.msk [vmem:[%s253 + $0xa0] sm:$0xff] %vm743, %v731
        %765 = vst.msk [vmem:[%s253 + $0xa8] sm:$0xff] %vm743, %v732
        %766 = vst.msk [vmem:[%s253 + $0xb0] sm:$0xff] %vm743, %v733
        %767 = vst.msk [vmem:[%s253 + $0xb8] sm:$0xff] %vm743, %v734
        %768 = vst.msk [vmem:[%s253 + $0xc0] sm:$0xff] %vm743, %v735
        %769 = vst.msk [vmem:[%s253 + $0xc8] sm:$0xff] %vm743, %v736
        %770 = vst.msk [vmem:[%s253 + $0xd0] sm:$0xff] %vm743, %v737
        %771 = vst.msk [vmem:[%s253 + $0xd8] sm:$0xff] %vm743, %v738
        %772 = vst.msk [vmem:[%s253 + $0xe0] sm:$0xff] %vm743, %v739
        %773 = vst.msk [vmem:[%s253 + $0xe8] sm:$0xff] %vm743, %v740
        %774 = vst.msk [vmem:[%s253 + $0xf0] sm:$0xff] %vm743, %v741
        %775 = vst.msk [vmem:[%s253 + $0xf8] sm:$0xff] %vm743, %v742
        %s776 = sand.u32 %s146, 1
        %s777 = scalar_lea.sflag [#allocation3], %s776
        %s778 = sand.u32 %s146, 1
        %s779 = smul.addr %s778, 256
        %s780 = scalar_lea.vmem [#allocation2], %s779
        // Predicated region
        $region37: #{bottleneck_fwd.5} parent=35 // pred_check
          %p781 = pneg %p156
        $region38: #{bottleneck_fwd.5} parent=35 // pred_check_branch
          %783 = sbr.rel (%p781) target = $region40
        $region39: #{bottleneck_fwd.5} parent=35 // pred_region
          %s784 = smul.u32 32, %s22
          %s786 = ssub.s32 4096, 4096
          %787 = vsyncadd %s777, %s786
          %s788 = sadd.s32 %s23, %s784
          %s789 = smul.addr %s788, 128
          %s790 = scalar_lea.hbm %s4, %s789
          %s791 = sshll.u32 %s780, 4
          %s792 = int_to_ptr.vmem [resolvable:$true] %s791
          %797 = dma.vmem_to_hbm [thread:$0]  %s792, 4096, %s790, %s777, 128, 128, 8
        $region40: #{bottleneck_fwd.5} parent=35 // pred_fallthru
          _
      $region36: #{bottleneck_fwd.5} parent=5 // pred_fallthru
        _
      %p798 = scmp.le.s32.totalorder 2, %s13
      // Predicated region
      $region41: #{bottleneck_fwd.5} parent=5 // pred_check
        %p799 = pneg %p798
      $region42: #{bottleneck_fwd.5} parent=5 // pred_check_branch
        %801 = sbr.rel (%p799) target = $region44
      $region43: #{bottleneck_fwd.5} parent=5 // pred_region
        %s802 = ssub.s32 %s13, 2
        // Predicated region
        $region45: #{bottleneck_fwd.5} parent=43 // pred_check
          %p803 = pneg %p162
        $region46: #{bottleneck_fwd.5} parent=43 // pred_check_branch
          %805 = sbr.rel (%p803) target = $region48
        $region47: #{bottleneck_fwd.5} parent=43 // pred_region
          %s806 = sand.u32 %s147, 1
          %s807 = scalar_lea.sflag [#allocation3], %s806
          %s808 = sand.u32 %s147, 1
          %s809 = smul.addr %s808, 256
          %s810 = scalar_lea.vmem [#allocation2], %s809
          %811 = dma.done %s807, 4096
        $region48: #{bottleneck_fwd.5} parent=43 // pred_fallthru
          _
      $region44: #{bottleneck_fwd.5} parent=5 // pred_fallthru
        _
    $region6: #{bottleneck_fwd.5} parent=1 // loop_footer
      %s17 = sadd.s32 1, %s13
    $region7: #{bottleneck_fwd.5} parent=1 // loop_footer_branch
      %12 = sbr.rel target = $region3
    $region8: #{bottleneck_fwd.5} parent=1 // loop_exit
      _
    %812 = vsyncpa [#allocation3], 1
    %s813 = scalar_lea.sflag [#allocation3], 1
    %814 = vsyncpa %s813, 1

// kernel: bottleneck_fwd.4
$region0: #{bottleneck_fwd.4}
  #allocation0 [shape = 'u32[]', space=smem, size = 0x4, offset = 0x4, fixed_abs, tag = 'smem constant byte address 0x4 - core index']
  #allocation1 [shape = 'u32[144,128]{1,0:T(1,128)}', space=vmem, size = 0x12000, scoped, tag = 'internal scratch']
  %s0 = inlined_call_operand.vmem [shape: bf16[2,18,18,16], index: 0, kind: input, shape index: {}]
  %s1 = inlined_call_operand.vmem [shape: bf16[144,16], index: 1, kind: input, shape index: {}]
  %s2 = inlined_call_operand.vmem [shape: f32[1,16], index: 2, kind: input, shape index: {}]
  %s3 = inlined_call_operand.vmem [shape: bf16[2,16,16,16], index: 3, kind: output, shape index: {}]
  %s4 = sld [smem:[#allocation0]]
  $region45: #{bottleneck_fwd.4} parent=0
    _
  %s6 = ssub.s32 1, %s4
  %s7 = scalar_select 0, %s6, %s4
  loop: start=0, step=1, limit=6
  $region2: #{bottleneck_fwd.4} parent=0 // loop_pre_header
    _
  $region3: #{bottleneck_fwd.4} parent=0 // loop_header
    %s9 = sphi 0, %s13
    %p10 = scmp.ge.s32.totalorder %s9, 6
    %s16 = sphi 0, %s35
    %s17 = sphi 0, %s31
    %s18 = sphi 0, %s27
    %s19 = sphi 0, %s16
    %s20 = sphi 0, %s17
    %s21 = sphi 0, %s18
    %s22 = sphi 0, %s19
    %s23 = sphi 0, %s20
    %s24 = sphi 0, %s21
    %s38 = sphi 0, %s40
    %s41 = sphi 0, %s38
    %s42 = sphi 0, %s41
    %s58 = sphi 0, %s42
    %s64 = sphi 0, %s66
    %s67 = sphi 0, %s64
    %s68 = sphi 0, %s67
    %s84 = sphi 0, %s68
    %s90 = sphi 0, %s92
    %s93 = sphi 0, %s90
    %s94 = sphi 0, %s93
    %s110 = sphi 0, %s94
    %s120 = sphi 0, %s122
    %s123 = sphi 0, %s120
    %s124 = sphi 0, %s123
    %s140 = sphi 0, %s124
  $region4: #{bottleneck_fwd.4} parent=0 // loop_header_branch
    %12 = sbr.rel (%p10) target = $region8
  $region5: #{bottleneck_fwd.4} parent=0 // loop_body
    %s14 = ssub.s32 %s9, 1
    %s15 = ssub.s32 %s9, 2
    %s25 = sadd.s32 1, %s18
    %p26 = scmp.ge.s32.totalorder %s25, 1
    %s27 = scalar_select %p26, 0, %s25
    %s28 = sadd.s32 1, %s17
    %s29 = scalar_select %p26, %s28, %s17
    %p30 = scmp.ge.s32.totalorder %s29, 2
    %s31 = scalar_select %p30, 0, %s29
    %s32 = sadd.s32 1, %s16
    %s33 = scalar_select %p30, %s32, %s16
    %p34 = scmp.ge.s32.totalorder %s33, 2
    %s35 = scalar_select %p34, 0, %s33
    %s36 = ssub.s32 %s16, %s35
    %p37 = scmp.eq.s32.totalorder %s36, 0
    %s39 = sadd.s32 %s38, 1
    %s40 = scalar_select %p37, %s38, %s39
    %p43 = pneg %p37
    %p44 = scmp.eq.s32.totalorder %s9, 3
    %p45 = por %p43, %p44
    %p46 = scmp.ne.s32.totalorder %s38, %s41
    %p47 = scmp.eq.s32.totalorder %s9, 0
    %p48 = por %p46, %p47
    %p49 = scmp.ne.s32.totalorder %s38, %s41
    %p50 = scmp.eq.s32.totalorder %s14, 3
    %p51 = por %p49, %p50
    %p52 = scmp.ne.s32.totalorder %s41, %s42
    %p53 = scmp.eq.s32.totalorder %s14, 0
    %p54 = por %p52, %p53
    %p55 = scmp.ne.s32.totalorder %s41, %s42
    %p56 = scmp.eq.s32.totalorder %s15, 3
    %p57 = por %p55, %p56
    %p59 = scmp.ne.s32.totalorder %s42, %s58
    %p60 = scmp.eq.s32.totalorder %s15, 0
    %p61 = por %p59, %p60
    %s62 = ssub.s32 %s18, %s27
    %p63 = scmp.eq.s32.totalorder %s62, 0
    %s65 = sadd.s32 %s64, 1
    %s66 = scalar_select %p63, %s64, %s65
    %p69 = pneg %p63
    %p70 = scmp.eq.s32.totalorder %s9, 3
    %p71 = por %p69, %p70
    %p72 = scmp.ne.s32.totalorder %s64, %s67
    %p73 = scmp.eq.s32.totalorder %s9, 0
    %p74 = por %p72, %p73
    %p75 = scmp.ne.s32.totalorder %s64, %s67
    %p76 = scmp.eq.s32.totalorder %s14, 3
    %p77 = por %p75, %p76
    %p78 = scmp.ne.s32.totalorder %s67, %s68
    %p79 = scmp.eq.s32.totalorder %s14, 0
    %p80 = por %p78, %p79
    %p81 = scmp.ne.s32.totalorder %s67, %s68
    %p82 = scmp.eq.s32.totalorder %s15, 3
    %p83 = por %p81, %p82
    %p85 = scmp.ne.s32.totalorder %s68, %s84
    %p86 = scmp.eq.s32.totalorder %s15, 0
    %p87 = por %p85, %p86
    %s88 = ssub.s32 %s18, %s27
    %p89 = scmp.eq.s32.totalorder %s88, 0
    %s91 = sadd.s32 %s90, 1
    %s92 = scalar_select %p89, %s90, %s91
    %p95 = pneg %p89
    %p96 = scmp.eq.s32.totalorder %s9, 3
    %p97 = por %p95, %p96
    %p98 = scmp.ne.s32.totalorder %s90, %s93
    %p99 = scmp.eq.s32.totalorder %s9, 0
    %p100 = por %p98, %p99
    %p101 = scmp.ne.s32.totalorder %s90, %s93
    %p102 = scmp.eq.s32.totalorder %s14, 3
    %p103 = por %p101, %p102
    %p104 = scmp.ne.s32.totalorder %s93, %s94
    %p105 = scmp.eq.s32.totalorder %s14, 0
    %p106 = por %p104, %p105
    %p107 = scmp.ne.s32.totalorder %s93, %s94
    %p108 = scmp.eq.s32.totalorder %s15, 3
    %p109 = por %p107, %p108
    %p111 = scmp.ne.s32.totalorder %s94, %s110
    %p112 = scmp.eq.s32.totalorder %s15, 0
    %p113 = por %p111, %p112
    %s114 = ssub.s32 %s16, %s35
    %s115 = ssub.s32 %s17, %s31
    %s116 = sor.u32 %s114, %s115
    %s117 = ssub.s32 %s18, %s27
    %s118 = sor.u32 %s116, %s117
    %p119 = scmp.eq.s32.totalorder %s118, 0
    %s121 = sadd.s32 %s120, 1
    %s122 = scalar_select %p119, %s120, %s121
    %p125 = pneg %p119
    %p126 = scmp.eq.s32.totalorder %s9, 3
    %p127 = por %p125, %p126
    %p128 = scmp.ne.s32.totalorder %s120, %s123
    %p129 = scmp.eq.s32.totalorder %s9, 0
    %p130 = por %p128, %p129
    %p131 = scmp.ne.s32.totalorder %s120, %s123
    %p132 = scmp.eq.s32.totalorder %s14, 3
    %p133 = por %p131, %p132
    %p134 = scmp.ne.s32.totalorder %s123, %s124
    %p135 = scmp.eq.s32.totalorder %s14, 0
    %p136 = por %p134, %p135
    %p137 = scmp.ne.s32.totalorder %s123, %s124
    %p138 = scmp.eq.s32.totalorder %s15, 3
    %p139 = por %p137, %p138
    %p141 = scmp.ne.s32.totalorder %s124, %s140
    %p142 = scmp.eq.s32.totalorder %s15, 0
    %p143 = por %p141, %p142
    %p144 = scmp.le.s32.totalorder 1, %s9
    %p145 = scmp.lt.s32.totalorder %s9, 5
    %p146 = pnand %p144, %p145
    %p147 = pneg %p146
    // Predicated region
    $region9: #{bottleneck_fwd.4} parent=5 // pred_check
      _
    $region10: #{bottleneck_fwd.4} parent=5 // pred_check_branch
      %149 = sbr.rel (%p146) target = $region12
    $region11: #{bottleneck_fwd.4} parent=5 // pred_region
      %s150 = ssub.s32 %s9, 1
      // Predicated region
      $region13: #{bottleneck_fwd.4} parent=11 // pred_check
        %p151 = pneg %p80
      $region14: #{bottleneck_fwd.4} parent=11 // pred_check_branch
        %153 = sbr.rel (%p151) target = $region16
      $region15: #{bottleneck_fwd.4} parent=11 // pred_region
        %p154 = scmp.lt.s32.totalorder %s21, 0
        %s155 = scalar_select %p154, %s21, 0
        %s156 = smul.addr %s155, 4
        %s157 = scalar_lea.vmem %s1, %s156
      $region16: #{bottleneck_fwd.4} parent=11 // pred_fallthru
        _
      // Predicated region
      $region17: #{bottleneck_fwd.4} parent=11 // pred_check
        %p158 = pneg %p106
      $region18: #{bottleneck_fwd.4} parent=11 // pred_check_branch
        %160 = sbr.rel (%p158) target = $region20
      $region19: #{bottleneck_fwd.4} parent=11 // pred_region
        %p161 = scmp.lt.s32.totalorder %s21, 0
        %s162 = scalar_select %p161, %s21, 0
        %s163 = scalar_lea.vmem %s2, %s162
      $region20: #{bottleneck_fwd.4} parent=11 // pred_fallthru
        _
    $region12: #{bottleneck_fwd.4} parent=5 // pred_fallthru
      _
    %p164 = scmp.lt.s32.totalorder %s9, 4
    // Predicated region
    $region21: #{bottleneck_fwd.4} parent=5 // pred_check
      %p165 = pneg %p164
    $region22: #{bottleneck_fwd.4} parent=5 // pred_check_branch
      %167 = sbr.rel (%p165) target = $region24
    $region23: #{bottleneck_fwd.4} parent=5 // pred_region
      // Predicated region
      $region25: #{bottleneck_fwd.4} parent=23 // pred_check
        %p168 = pneg %p48
      $region26: #{bottleneck_fwd.4} parent=23 // pred_check_branch
        %170 = sbr.rel (%p168) target = $region28
      $region27: #{bottleneck_fwd.4} parent=23 // pred_region
        %p171 = scmp.lt.s32.totalorder %s16, 1
        %s172 = scalar_select %p171, %s16, 1
        %s173 = smul.addr %s172, 54
        %s174 = smul.addr %s173, 4
        %s175 = scalar_lea.vmem %s0, %s174
      $region28: #{bottleneck_fwd.4} parent=23 // pred_fallthru
        _
    $region24: #{bottleneck_fwd.4} parent=5 // pred_fallthru
      _
    %p176 = scmp.le.s32.totalorder 1, %s9
    %p177 = scmp.lt.s32.totalorder %s9, 5
    %p178 = pnand %p176, %p177
    %p179 = pneg %p178
    // Predicated region
    $region29: #{bottleneck_fwd.4} parent=5 // pred_check
      _
    $region30: #{bottleneck_fwd.4} parent=5 // pred_check_branch
      %181 = sbr.rel (%p178) target = $region32
    $region31: #{bottleneck_fwd.4} parent=5 // pred_region
      %s182 = ssub.s32 %s9, 1
      %p183 = scmp.lt.s32.totalorder %s19, 1
      %s184 = scalar_select %p183, %s19, 1
      %s185 = smul.addr %s184, 54
      %s186 = smul.addr %s185, 4
      %s187 = scalar_lea.vmem %s0, %s186
      %p188 = pneg %p54
      %p189 = pneg %p51
      %p190 = scmp.lt.s32.totalorder %s21, 0
      %s191 = scalar_select %p190, %s21, 0
      %s192 = smul.addr %s191, 4
      %s193 = scalar_lea.vmem %s1, %s192
      %p194 = pneg %p80
      %p195 = pneg %p77
      %p196 = scmp.lt.s32.totalorder %s21, 0
      %s197 = scalar_select %p196, %s21, 0
      %s198 = scalar_lea.vmem %s2, %s197
      %p199 = pneg %p106
      %p200 = pneg %p103
      %p201 = pneg %p136
      %p202 = pneg %p133
      %s203 = smul.u32 8, %s20
      %p204 = scmp.lt.s32.totalorder %s19, 1
      %s205 = scalar_select %p204, %s19, 1
      %p206 = scmp.lt.s32.totalorder %s203, 15
      %s207 = scalar_select %p206, %s203, 15
      %p208 = scmp.lt.s32.totalorder %s21, 0
      %s209 = scalar_select %p208, %s21, 0
      %s210 = smul.addr %s207, 2
      %s211 = sadd.s32 %s209, %s210
      %s212 = smul.addr %s205, 32
      %s213 = sadd.s32 %s211, %s212
      %s214 = smul.addr %s213, 4
      %s215 = scalar_lea.vmem %s3, %s214
      %p216 = scmp.lt.s32.totalorder %s19, 1
      %s217 = scalar_select %p216, %s19, 1
      %s218 = smul.addr %s217, 54
      %s219 = smul.addr %s218, 4
      %s220 = scalar_lea.vmem %s0, %s219
      %p221 = scmp.lt.s32.totalorder %s21, 0
      %s222 = scalar_select %p221, %s21, 0
      %s223 = smul.addr %s222, 4
      %s224 = scalar_lea.vmem %s1, %s223
      %p225 = scmp.lt.s32.totalorder %s21, 0
      %s226 = scalar_select %p225, %s21, 0
      %s227 = scalar_lea.vmem %s2, %s226
      %s228 = smul.u32 8, %s20
      %p229 = scmp.lt.s32.totalorder %s19, 1
      %s230 = scalar_select %p229, %s19, 1
      %p231 = scmp.lt.s32.totalorder %s228, 15
      %s232 = scalar_select %p231, %s228, 15
      %p233 = scmp.lt.s32.totalorder %s21, 0
      %s234 = scalar_select %p233, %s21, 0
      %s235 = smul.addr %s232, 2
      %s236 = sadd.s32 %s234, %s235
      %s237 = smul.addr %s230, 32
      %s238 = sadd.s32 %s236, %s237
      %s239 = smul.addr %s238, 4
      %s240 = scalar_lea.vmem %s3, %s239
      %s241 = smul.u32 8, %s20
      %s243 = smul.u32 %s20, 8
      %s244 = smul.u32 %s243, 3
      %s245 = smul.addr %s244, 4
      %s246 = scalar_lea.vmem %s220, %s245
      %v247 = vld [vmem:[%s246] sm:$0xf]
      %v248 = vld [vmem:[%s246 + $0x4] sm:$0xf]
      %v249 = vld [vmem:[%s246 + $0x8] sm:$0x1]
      %v250 = vld [vmem:[%s246 + $0xc] sm:$0xf]
      %v251 = vld [vmem:[%s246 + $0x10] sm:$0xf]
      %v252 = vld [vmem:[%s246 + $0x14] sm:$0x1]
      %v253 = vld [vmem:[%s246 + $0x18] sm:$0xf]
      %v254 = vld [vmem:[%s246 + $0x1c] sm:$0xf]
      %v255 = vld [vmem:[%s246 + $0x20] sm:$0x1]
      %v256 = vld [vmem:[%s246 + $0x24] sm:$0xf]
      %v257 = vld [vmem:[%s246 + $0x28] sm:$0xf]
      %v258 = vld [vmem:[%s246 + $0x2c] sm:$0x1]
      %v259 = vld [vmem:[%s246 + $0x30] sm:$0xf]
      %v260 = vld [vmem:[%s246 + $0x34] sm:$0xf]
      %v261 = vld [vmem:[%s246 + $0x38] sm:$0x1]
      %v262 = vld [vmem:[%s246 + $0x3c] sm:$0xf]
      %v263 = vld [vmem:[%s246 + $0x40] sm:$0xf]
      %v264 = vld [vmem:[%s246 + $0x44] sm:$0x1]
      %v265 = vld [vmem:[%s246 + $0x48] sm:$0xf]
      %v266 = vld [vmem:[%s246 + $0x4c] sm:$0xf]
      %v267 = vld [vmem:[%s246 + $0x50] sm:$0x1]
      %v268 = vld [vmem:[%s246 + $0x54] sm:$0xf]
      %v269 = vld [vmem:[%s246 + $0x58] sm:$0xf]
      %v270 = vld [vmem:[%s246 + $0x5c] sm:$0x1]
      %v271 = vld [vmem:[%s246 + $0x60] sm:$0xf]
      %v272 = vld [vmem:[%s246 + $0x64] sm:$0xf]
      %v273 = vld [vmem:[%s246 + $0x68] sm:$0x1]
      %v274 = vld [vmem:[%s246 + $0x6c] sm:$0xf]
      %v275 = vld [vmem:[%s246 + $0x70] sm:$0xf]
      %v276 = vld [vmem:[%s246 + $0x74] sm:$0x1]
      %v293 = vunpack.c.l.b16 %v247
      %v294 = vunpack.c.l.b16 %v248
      %v295 = vunpack.c.l.b16 %v250
      %v296 = vunpack.c.l.b16 %v251
      %v297 = vunpack.c.l.b16 %v253
      %v298 = vunpack.c.l.b16 %v254
      %v299 = vunpack.c.l.b16 %v256
      %v300 = vunpack.c.l.b16 %v257
      %v301 = vunpack.c.l.b16 %v259
      %v302 = vunpack.c.l.b16 %v260
      %v303 = vunpack.c.l.b16 %v262
      %v304 = vunpack.c.l.b16 %v263
      %v305 = vunpack.c.l.b16 %v265
      %v306 = vunpack.c.l.b16 %v266
      %v307 = vunpack.c.l.b16 %v268
      %v308 = vunpack.c.l.b16 %v269
      %v309 = vpack.c.b16 %v294, %v293
      %v310 = vpack.c.b16 %v296, %v295
      %v311 = vpack.c.b16 %v298, %v297
      %v312 = vpack.c.b16 %v300, %v299
      %v313 = vpack.c.b16 %v302, %v301
      %v314 = vpack.c.b16 %v304, %v303
      %v315 = vpack.c.b16 %v306, %v305
      %v316 = vpack.c.b16 %v308, %v307
      %v325 = vunpack.c.l.b16 %v249
      %v326 = vunpack.c.l.b16 %v252
      %v327 = vunpack.c.l.b16 %v255
      %v328 = vunpack.c.l.b16 %v258
      %v329 = vunpack.c.l.b16 %v261
      %v330 = vunpack.c.l.b16 %v264
      %v331 = vunpack.c.l.b16 %v267
      %v332 = vunpack.c.l.b16 %v270
      %v333 = vpack.c.b16 %v325, %v325
      %v334 = vpack.c.b16 %v326, %v326
      %v335 = vpack.c.b16 %v327, %v327
      %v336 = vpack.c.b16 %v328, %v328
      %v337 = vpack.c.b16 %v329, %v329
      %v338 = vpack.c.b16 %v330, %v330
      %v339 = vpack.c.b16 %v331, %v331
      %v340 = vpack.c.b16 %v332, %v332
      %vm341 = vsmask.f32 7424
      %v343 = vshrl.u32 %v309, 16
      %v345 = vshll.u32 %v309, 16
      %v347 = vrot.slane %v345, 1
      %v348 = vor.u32 %v343, %v347
      %v350 = vshll.u32 %v333, 16
      %v352 = vrot.slane %v350, 1
      %v353 = vsel %vm341, %v348, %v352
      %v355 = vshrl.u32 %v310, 16
      %v357 = vshll.u32 %v310, 16
      %v359 = vrot.slane %v357, 1
      %v360 = vor.u32 %v355, %v359
      %v362 = vshll.u32 %v334, 16
      %v364 = vrot.slane %v362, 1
      %v365 = vsel %vm341, %v360, %v364
      %v367 = vshrl.u32 %v311, 16
      %v369 = vshll.u32 %v311, 16
      %v371 = vrot.slane %v369, 1
      %v372 = vor.u32 %v367, %v371
      %v374 = vshll.u32 %v335, 16
      %v376 = vrot.slane %v374, 1
      %v377 = vsel %vm341, %v372, %v376
      %v379 = vshrl.u32 %v312, 16
      %v381 = vshll.u32 %v312, 16
      %v383 = vrot.slane %v381, 1
      %v384 = vor.u32 %v379, %v383
      %v386 = vshll.u32 %v336, 16
      %v388 = vrot.slane %v386, 1
      %v389 = vsel %vm341, %v384, %v388
      %v391 = vshrl.u32 %v313, 16
      %v393 = vshll.u32 %v313, 16
      %v395 = vrot.slane %v393, 1
      %v396 = vor.u32 %v391, %v395
      %v398 = vshll.u32 %v337, 16
      %v400 = vrot.slane %v398, 1
      %v401 = vsel %vm341, %v396, %v400
      %v403 = vshrl.u32 %v314, 16
      %v405 = vshll.u32 %v314, 16
      %v407 = vrot.slane %v405, 1
      %v408 = vor.u32 %v403, %v407
      %v410 = vshll.u32 %v338, 16
      %v412 = vrot.slane %v410, 1
      %v413 = vsel %vm341, %v408, %v412
      %v415 = vshrl.u32 %v315, 16
      %v417 = vshll.u32 %v315, 16
      %v419 = vrot.slane %v417, 1
      %v420 = vor.u32 %v415, %v419
      %v422 = vshll.u32 %v339, 16
      %v424 = vrot.slane %v422, 1
      %v425 = vsel %vm341, %v420, %v424
      %v427 = vshrl.u32 %v316, 16
      %v429 = vshll.u32 %v316, 16
      %v431 = vrot.slane %v429, 1
      %v432 = vor.u32 %v427, %v431
      %v434 = vshll.u32 %v340, 16
      %v436 = vrot.slane %v434, 1
      %v437 = vsel %vm341, %v432, %v436
      %438 = vrot.lane.b32.xlu0 %v353, 16
      %v439 = vpop.permute.xlu0 %438
      %440 = vrot.lane.b32.xlu0 %v365, 16
      %v441 = vpop.permute.xlu0 %440
      %442 = vrot.lane.b32.xlu0 %v377, 16
      %v443 = vpop.permute.xlu0 %442
      %444 = vrot.lane.b32.xlu0 %v389, 16
      %v445 = vpop.permute.xlu0 %444
      %446 = vrot.lane.b32.xlu0 %v401, 16
      %v447 = vpop.permute.xlu0 %446
      %448 = vrot.lane.b32.xlu0 %v413, 16
      %v449 = vpop.permute.xlu0 %448
      %450 = vrot.lane.b32.xlu0 %v425, 16
      %v451 = vpop.permute.xlu0 %450
      %452 = vrot.lane.b32.xlu0 %v437, 16
      %v453 = vpop.permute.xlu0 %452
      %vm454 = vcmask 1046528
      %v455 = vrot.slane %v309, 1
      %v456 = vrot.slane %v333, 1
      %v457 = vsel %vm454, %v455, %v456
      %v458 = vrot.slane %v310, 1
      %v459 = vrot.slane %v334, 1
      %v460 = vsel %vm454, %v458, %v459
      %v461 = vrot.slane %v311, 1
      %v462 = vrot.slane %v335, 1
      %v463 = vsel %vm454, %v461, %v462
      %v464 = vrot.slane %v312, 1
      %v465 = vrot.slane %v336, 1
      %v466 = vsel %vm454, %v464, %v465
      %v467 = vrot.slane %v313, 1
      %v468 = vrot.slane %v337, 1
      %v469 = vsel %vm454, %v467, %v468
      %v470 = vrot.slane %v314, 1
      %v471 = vrot.slane %v338, 1
      %v472 = vsel %vm454, %v470, %v471
      %v473 = vrot.slane %v315, 1
      %v474 = vrot.slane %v339, 1
      %v475 = vsel %vm454, %v473, %v474
      %v476 = vrot.slane %v316, 1
      %v477 = vrot.slane %v340, 1
      %v478 = vsel %vm454, %v476, %v477
      %479 = vrot.lane.b32.xlu0 %v457, 32
      %v480 = vpop.permute.xlu0 %479
      %481 = vrot.lane.b32.xlu0 %v460, 32
      %v482 = vpop.permute.xlu0 %481
      %483 = vrot.lane.b32.xlu0 %v463, 32
      %v484 = vpop.permute.xlu0 %483
      %485 = vrot.lane.b32.xlu0 %v466, 32
      %v486 = vpop.permute.xlu0 %485
      %487 = vrot.lane.b32.xlu0 %v469, 32
      %v488 = vpop.permute.xlu0 %487
      %489 = vrot.lane.b32.xlu0 %v472, 32
      %v490 = vpop.permute.xlu0 %489
      %491 = vrot.lane.b32.xlu0 %v475, 32
      %v492 = vpop.permute.xlu0 %491
      %493 = vrot.lane.b32.xlu0 %v478, 32
      %v494 = vpop.permute.xlu0 %493
      %v497 = vunpack.c.l.b16 %v271
      %v498 = vunpack.c.l.b16 %v272
      %v499 = vpack.c.b16 %v498, %v497
      %500 = vrot.lane.b32.xlu0 %v310, 48
      %v501 = vpop.permute.xlu0 %500
      %502 = vrot.lane.b32.xlu0 %v311, 48
      %v503 = vpop.permute.xlu0 %502
      %504 = vrot.lane.b32.xlu0 %v312, 48
      %v505 = vpop.permute.xlu0 %504
      %506 = vrot.lane.b32.xlu0 %v313, 48
      %v507 = vpop.permute.xlu0 %506
      %508 = vrot.lane.b32.xlu0 %v314, 48
      %v509 = vpop.permute.xlu0 %508
      %510 = vrot.lane.b32.xlu0 %v315, 48
      %v511 = vpop.permute.xlu0 %510
      %512 = vrot.lane.b32.xlu0 %v316, 48
      %v513 = vpop.permute.xlu0 %512
      %514 = vrot.lane.b32.xlu0 %v499, 48
      %v515 = vpop.permute.xlu0 %514
      %v517 = vunpack.c.l.b16 %v273
      %v518 = vpack.c.b16 %v517, %v517
      %v520 = vshrl.u32 %v499, 16
      %v522 = vshll.u32 %v499, 16
      %v524 = vrot.slane %v522, 1
      %v525 = vor.u32 %v520, %v524
      %v527 = vshll.u32 %v518, 16
      %v529 = vrot.slane %v527, 1
      %v530 = vsel %vm341, %v525, %v529
      %531 = vrot.lane.b32.xlu0 %v365, 64
      %v532 = vpop.permute.xlu0 %531
      %533 = vrot.lane.b32.xlu0 %v377, 64
      %v534 = vpop.permute.xlu0 %533
      %535 = vrot.lane.b32.xlu0 %v389, 64
      %v536 = vpop.permute.xlu0 %535
      %537 = vrot.lane.b32.xlu0 %v401, 64
      %v538 = vpop.permute.xlu0 %537
      %539 = vrot.lane.b32.xlu0 %v413, 64
      %v540 = vpop.permute.xlu0 %539
      %541 = vrot.lane.b32.xlu0 %v425, 64
      %v542 = vpop.permute.xlu0 %541
      %543 = vrot.lane.b32.xlu0 %v437, 64
      %v544 = vpop.permute.xlu0 %543
      %545 = vrot.lane.b32.xlu0 %v530, 64
      %v546 = vpop.permute.xlu0 %545
      %v547 = vrot.slane %v499, 1
      %v548 = vrot.slane %v518, 1
      %v549 = vsel %vm454, %v547, %v548
      %550 = vrot.lane.b32.xlu0 %v460, 80
      %v551 = vpop.permute.xlu0 %550
      %552 = vrot.lane.b32.xlu0 %v463, 80
      %v553 = vpop.permute.xlu0 %552
      %554 = vrot.lane.b32.xlu0 %v466, 80
      %v555 = vpop.permute.xlu0 %554
      %556 = vrot.lane.b32.xlu0 %v469, 80
      %v557 = vpop.permute.xlu0 %556
      %558 = vrot.lane.b32.xlu0 %v472, 80
      %v559 = vpop.permute.xlu0 %558
      %560 = vrot.lane.b32.xlu0 %v475, 80
      %v561 = vpop.permute.xlu0 %560
      %562 = vrot.lane.b32.xlu0 %v478, 80
      %v563 = vpop.permute.xlu0 %562
      %564 = vrot.lane.b32.xlu0 %v549, 80
      %v565 = vpop.permute.xlu0 %564
      %v568 = vunpack.c.l.b16 %v274
      %v569 = vunpack.c.l.b16 %v275
      %v570 = vpack.c.b16 %v569, %v568
      %571 = vrot.lane.b32.xlu0 %v311, 96
      %v572 = vpop.permute.xlu0 %571
      %573 = vrot.lane.b32.xlu0 %v312, 96
      %v574 = vpop.permute.xlu0 %573
      %575 = vrot.lane.b32.xlu0 %v313, 96
      %v576 = vpop.permute.xlu0 %575
      %577 = vrot.lane.b32.xlu0 %v314, 96
      %v578 = vpop.permute.xlu0 %577
      %579 = vrot.lane.b32.xlu0 %v315, 96
      %v580 = vpop.permute.xlu0 %579
      %581 = vrot.lane.b32.xlu0 %v316, 96
      %v582 = vpop.permute.xlu0 %581
      %583 = vrot.lane.b32.xlu0 %v499, 96
      %v584 = vpop.permute.xlu0 %583
      %585 = vrot.lane.b32.xlu0 %v570, 96
      %v586 = vpop.permute.xlu0 %585
      %v588 = vunpack.c.l.b16 %v276
      %v589 = vpack.c.b16 %v588, %v588
      %v591 = vshrl.u32 %v570, 16
      %v593 = vshll.u32 %v570, 16
      %v595 = vrot.slane %v593, 1
      %v596 = vor.u32 %v591, %v595
      %v598 = vshll.u32 %v589, 16
      %v600 = vrot.slane %v598, 1
      %v601 = vsel %vm341, %v596, %v600
      %602 = vrot.lane.b32.xlu0 %v377, 112
      %v603 = vpop.permute.xlu0 %602
      %604 = vrot.lane.b32.xlu0 %v389, 112
      %v605 = vpop.permute.xlu0 %604
      %606 = vrot.lane.b32.xlu0 %v401, 112
      %v607 = vpop.permute.xlu0 %606
      %608 = vrot.lane.b32.xlu0 %v413, 112
      %v609 = vpop.permute.xlu0 %608
      %610 = vrot.lane.b32.xlu0 %v425, 112
      %v611 = vpop.permute.xlu0 %610
      %612 = vrot.lane.b32.xlu0 %v437, 112
      %v613 = vpop.permute.xlu0 %612
      %614 = vrot.lane.b32.xlu0 %v530, 112
      %v615 = vpop.permute.xlu0 %614
      %616 = vrot.lane.b32.xlu0 %v601, 112
      %v617 = vpop.permute.xlu0 %616
      %v618 = vrot.slane %v570, 1
      %v619 = vrot.slane %v589, 1
      %v620 = vsel %vm454, %v618, %v619
      %vm621 = vcmask 130048
      %v623 = vsel %vm621, %v309, %v439
      %v625 = vsel %vm621, %v310, %v441
      %v627 = vsel %vm621, %v311, %v443
      %v629 = vsel %vm621, %v312, %v445
      %v631 = vsel %vm621, %v313, %v447
      %v633 = vsel %vm621, %v314, %v449
      %v635 = vsel %vm621, %v315, %v451
      %v637 = vsel %vm621, %v316, %v453
      %vm638 = vcmask 261120
      %v640 = vsel %vm638, %v623, %v480
      %v642 = vsel %vm638, %v625, %v482
      %v644 = vsel %vm638, %v627, %v484
      %v646 = vsel %vm638, %v629, %v486
      %v648 = vsel %vm638, %v631, %v488
      %v650 = vsel %vm638, %v633, %v490
      %v652 = vsel %vm638, %v635, %v492
      %v654 = vsel %vm638, %v637, %v494
      %vm655 = vcmask 392192
      %v657 = vsel %vm655, %v640, %v501
      %v659 = vsel %vm655, %v642, %v503
      %v661 = vsel %vm655, %v644, %v505
      %v663 = vsel %vm655, %v646, %v507
      %v665 = vsel %vm655, %v648, %v509
      %v667 = vsel %vm655, %v650, %v511
      %v669 = vsel %vm655, %v652, %v513
      %v671 = vsel %vm655, %v654, %v515
      %vm672 = vcmask 523264
      %v674 = vsel %vm672, %v657, %v532
      %v676 = vsel %vm672, %v659, %v534
      %v678 = vsel %vm672, %v661, %v536
      %v680 = vsel %vm672, %v663, %v538
      %v682 = vsel %vm672, %v665, %v540
      %v684 = vsel %vm672, %v667, %v542
      %v686 = vsel %vm672, %v669, %v544
      %v688 = vsel %vm672, %v671, %v546
      %vm689 = vcmask 654336
      %v691 = vsel %vm689, %v674, %v551
      %v693 = vsel %vm689, %v676, %v553
      %v695 = vsel %vm689, %v678, %v555
      %v697 = vsel %vm689, %v680, %v557
      %v699 = vsel %vm689, %v682, %v559
      %v701 = vsel %vm689, %v684, %v561
      %v703 = vsel %vm689, %v686, %v563
      %v705 = vsel %vm689, %v688, %v565
      %vm706 = vcmask 785408
      %v708 = vsel %vm706, %v691, %v572
      %v710 = vsel %vm706, %v693, %v574
      %v712 = vsel %vm706, %v695, %v576
      %v714 = vsel %vm706, %v697, %v578
      %v716 = vsel %vm706, %v699, %v580
      %v718 = vsel %vm706, %v701, %v582
      %v720 = vsel %vm706, %v703, %v584
      %v722 = vsel %vm706, %v705, %v586
      %vm723 = vcmask 916480
      %v725 = vsel %vm723, %v708, %v603
      %v728 = vsel %vm723, %v710, %v605
      %v731 = vsel %vm723, %v712, %v607
      %v734 = vsel %vm723, %v714, %v609
      %v737 = vsel %vm723, %v716, %v611
      %v740 = vsel %vm723, %v718, %v613
      %v743 = vsel %vm723, %v720, %v615
      %v746 = vsel %vm723, %v722, %v617
      %v748 = vld [vmem:[%s224] sm:$0xf]
      %v749 = vld [vmem:[%s224 + $0x4] sm:$0xf]
      %v750 = vld [vmem:[%s224 + $0x8] sm:$0xf]
      %v751 = vld [vmem:[%s224 + $0xc] sm:$0xf]
      %v752 = vld [vmem:[%s224 + $0x10] sm:$0xf]
      %v753 = vld [vmem:[%s224 + $0x14] sm:$0xf]
      %v754 = vld [vmem:[%s224 + $0x18] sm:$0xf]
      %v755 = vld [vmem:[%s224 + $0x1c] sm:$0xf]
      %v756 = vld [vmem:[%s224 + $0x20] sm:$0xf]
      %v757 = vld [vmem:[%s224 + $0x24] sm:$0xf]
      %v758 = vld [vmem:[%s224 + $0x28] sm:$0xf]
      %v759 = vld [vmem:[%s224 + $0x2c] sm:$0xf]
      %v760 = vld [vmem:[%s224 + $0x30] sm:$0xf]
      %v761 = vld [vmem:[%s224 + $0x34] sm:$0xf]
      %v762 = vld [vmem:[%s224 + $0x38] sm:$0xf]
      %v763 = vld [vmem:[%s224 + $0x3c] sm:$0xf]
      %v764 = vld [vmem:[%s224 + $0x40] sm:$0xf]
      %v765 = vld [vmem:[%s224 + $0x44] sm:$0xf]
      %v766 = vld [vmem:[%s227] sm:$0x1]
      %v768 = vlaneseq
      %v769 = vshrl.u32 %v768, 7
      %v770 = vsub.s32 0, %v769
      %v771 = vrot.slane %v766, %v770
      %v791 = vunpack.c.l.b16 %v748
      %v792 = vunpack.c.l.b16 %v749
      %v793 = vunpack.c.l.b16 %v750
      %v794 = vunpack.c.l.b16 %v751
      %v795 = vunpack.c.l.b16 %v752
      %v796 = vunpack.c.l.b16 %v753
      %v797 = vunpack.c.l.b16 %v754
      %v798 = vunpack.c.l.b16 %v755
      %v799 = vunpack.c.l.b16 %v756
      %v800 = vunpack.c.l.b16 %v757
      %v801 = vunpack.c.l.b16 %v758
      %v802 = vunpack.c.l.b16 %v759
      %v803 = vunpack.c.l.b16 %v760
      %v804 = vunpack.c.l.b16 %v761
      %v805 = vunpack.c.l.b16 %v762
      %v806 = vunpack.c.l.b16 %v763
      %v807 = vunpack.c.l.b16 %v764
      %v808 = vunpack.c.l.b16 %v765
      %v809 = vpack.c.b16 %v792, %v791
      %v810 = vpack.c.b16 %v794, %v793
      %v811 = vpack.c.b16 %v796, %v795
      %v812 = vpack.c.b16 %v798, %v797
      %v813 = vpack.c.b16 %v800, %v799
      %v814 = vpack.c.b16 %v802, %v801
      %v815 = vpack.c.b16 %v804, %v803
      %v816 = vpack.c.b16 %v806, %v805
      %v817 = vpack.c.b16 %v808, %v807
      %v828 = vsel %vm621, %v463, 0
      %v831 = vsel %vm621, %v466, 0
      %v834 = vsel %vm621, %v469, 0
      %v837 = vsel %vm621, %v472, 0
      %v840 = vsel %vm621, %v475, 0
      %v843 = vsel %vm621, %v478, 0
      %v846 = vsel %vm621, %v549, 0
      %v849 = vsel %vm621, %v620, 0
      %851 = vmatprep.subr.bf16.mxu0 0
      %852 = vmatpush1.bf16.msra.mxu0 %v809
      %853 = vmatprep.subr.bf16.mxu0 0
      %854 = vmatpush1.bf16.msra.mxu0 %v810
      %855 = vmatprep.subr.bf16.mxu0 0
      %856 = vmatpush1.bf16.msra.mxu0 %v811
      %857 = vmatprep.subr.bf16.mxu0 0
      %858 = vmatpush1.bf16.msra.mxu0 %v812
      %859 = vmatprep.subr.bf16.mxu0 0
      %860 = vmatpush1.bf16.msra.mxu0 %v813
      %861 = vmatprep.subr.bf16.mxu0 0
      %862 = vmatpush1.bf16.msra.mxu0 %v814
      %863 = vmatprep.subr.bf16.mxu0 0
      %864 = vmatpush1.bf16.msra.mxu0 %v815
      %865 = vmatprep.subr.bf16.mxu0 0
      %866 = vmatpush1.bf16.msra.mxu0 %v816
      %867 = vmatprep.subr.bf16.mxu0 0
      %868 = vmatpush1.bf16.msra.mxu0 %v817
      %869 = vmatprep.subr.bf16.mxu0 0
      %870 = vmatpush1.bf16.msra.mxu0 0
      %871 = vmatprep.subr.bf16.mxu0 0
      %872 = vmatpush1.bf16.msra.mxu0 0
      %873 = vmatprep.subr.bf16.mxu0 0
      %874 = vmatpush1.bf16.msra.mxu0 0
      %875 = vmatprep.subr.bf16.mxu0 0
      %876 = vmatpush1.bf16.msra.mxu0 0
      %877 = vmatprep.subr.bf16.mxu0 0
      %878 = vmatpush1.bf16.msra.mxu0 0
      %879 = vmatprep.subr.bf16.mxu0 0
      %880 = vmatpush1.bf16.msra.mxu0 0
      %881 = vmatprep.subr.bf16.mxu0 0
      %882 = vmatpush1.bf16.msra.mxu0 0
      %883 = vmatprep.mubr.bf16.mxu0 %v828
      %884 = vmatmul.mubr.bf16.gmra.mrb[0].mxu0 %v725
      %v885 = vpop.f32.mrb[0].mxu0
      %v886 = vadd.f32 %v771, %v885
      %v887 = vpop.f32.mrb[0].mxu0
      %v888 = vpop.f32.mrb[0].mxu0
      %v889 = vadd.f32 %v771, %v888
      %v890 = vpop.f32.mrb[0].mxu0
      %891 = vmatprep.mubr.bf16.mxu0 %v831
      %892 = vmatmul.mubr.bf16.gmra.mrb[0].mxu0 %v728
      %v893 = vpop.f32.mrb[0].mxu0
      %v894 = vadd.f32 %v771, %v893
      %v895 = vpop.f32.mrb[0].mxu0
      %v896 = vpop.f32.mrb[0].mxu0
      %v897 = vadd.f32 %v771, %v896
      %v898 = vpop.f32.mrb[0].mxu0
      %899 = vmatprep.mubr.bf16.mxu0 %v834
      %900 = vmatmul.mubr.bf16.gmra.mrb[0].mxu0 %v731
      %v901 = vpop.f32.mrb[0].mxu0
      %v902 = vadd.f32 %v771, %v901
      %v903 = vpop.f32.mrb[0].mxu0
      %v904 = vpop.f32.mrb[0].mxu0
      %v905 = vadd.f32 %v771, %v904
      %v906 = vpop.f32.mrb[0].mxu0
      %907 = vmatprep.mubr.bf16.mxu0 %v837
      %908 = vmatmul.mubr.bf16.gmra.mrb[0].mxu0 %v734
      %v909 = vpop.f32.mrb[0].mxu0
      %v910 = vadd.f32 %v771, %v909
      %v911 = vpop.f32.mrb[0].mxu0
      %v912 = vpop.f32.mrb[0].mxu0
      %v913 = vadd.f32 %v771, %v912
      %v914 = vpop.f32.mrb[0].mxu0
      %915 = vmatprep.mubr.bf16.mxu0 %v840
      %916 = vmatmul.mubr.bf16.gmra.mrb[0].mxu0 %v737
      %v917 = vpop.f32.mrb[0].mxu0
      %v918 = vadd.f32 %v771, %v917
      %v919 = vpop.f32.mrb[0].mxu0
      %v920 = vpop.f32.mrb[0].mxu0
      %v921 = vadd.f32 %v771, %v920
      %v922 = vpop.f32.mrb[0].mxu0
      %923 = vmatprep.mubr.bf16.mxu0 %v843
      %924 = vmatmul.mubr.bf16.gmra.mrb[0].mxu0 %v740
      %v925 = vpop.f32.mrb[0].mxu0
      %v926 = vadd.f32 %v771, %v925
      %v927 = vpop.f32.mrb[0].mxu0
      %v928 = vpop.f32.mrb[0].mxu0
      %v929 = vadd.f32 %v771, %v928
      %v930 = vpop.f32.mrb[0].mxu0
      %931 = vmatprep.mubr.bf16.mxu0 %v846
      %932 = vmatmul.mubr.bf16.gmra.mrb[0].mxu0 %v743
      %v933 = vpop.f32.mrb[0].mxu0
      %v934 = vadd.f32 %v771, %v933
      %v935 = vpop.f32.mrb[0].mxu0
      %v936 = vpop.f32.mrb[0].mxu0
      %v937 = vadd.f32 %v771, %v936
      %v938 = vpop.f32.mrb[0].mxu0
      %939 = vmatprep.mubr.bf16.mxu0 %v849
      %940 = vmatmul.mubr.bf16.gmra.mrb[0].mxu0 %v746
      %v941 = vpop.f32.mrb[0].mxu0
      %v942 = vadd.f32 %v771, %v941
      %v943 = vpop.f32.mrb[0].mxu0
      %v944 = vpop.f32.mrb[0].mxu0
      %v945 = vadd.f32 %v771, %v944
      %v946 = vpop.f32.mrb[0].mxu0
      %947 = vdwg.mxu0
      %v948 = vmax.f32 %v886, 0.0
      %v949 = vmax.f32 %v889, 0.0
      %v950 = vmax.f32 %v894, 0.0
      %v951 = vmax.f32 %v897, 0.0
      %v952 = vmax.f32 %v902, 0.0
      %v953 = vmax.f32 %v905, 0.0
      %v954 = vmax.f32 %v910, 0.0
      %v955 = vmax.f32 %v913, 0.0
      %v956 = vmax.f32 %v918, 0.0
      %v957 = vmax.f32 %v921, 0.0
      %v958 = vmax.f32 %v926, 0.0
      %v959 = vmax.f32 %v929, 0.0
      %v960 = vmax.f32 %v934, 0.0
      %v961 = vmax.f32 %v937, 0.0
      %v962 = vmax.f32 %v942, 0.0
      %v963 = vmax.f32 %v945, 0.0
      %v964 = vpack.c.bf16 %v949, %v948
      %v965 = vpack.c.bf16 %v951, %v950
      %v966 = vpack.c.bf16 %v953, %v952
      %v967 = vpack.c.bf16 %v955, %v954
      %v968 = vpack.c.bf16 %v957, %v956
      %v969 = vpack.c.bf16 %v959, %v958
      %v970 = vpack.c.bf16 %v961, %v960
      %v971 = vpack.c.bf16 %v963, %v962
      %v980 = vunpack.c.l.b16 %v964
      %v981 = vunpack.c.h.b16 %v964
      %v982 = vunpack.c.l.b16 %v965
      %v983 = vunpack.c.h.b16 %v965
      %v984 = vunpack.c.l.b16 %v966
      %v985 = vunpack.c.h.b16 %v966
      %v986 = vunpack.c.l.b16 %v967
      %v987 = vunpack.c.h.b16 %v967
      %v988 = vunpack.c.l.b16 %v968
      %v989 = vunpack.c.h.b16 %v968
      %v990 = vunpack.c.l.b16 %v969
      %v991 = vunpack.c.h.b16 %v969
      %v992 = vunpack.c.l.b16 %v970
      %v993 = vunpack.c.h.b16 %v970
      %v994 = vunpack.c.l.b16 %v971
      %v995 = vunpack.c.h.b16 %v971
      %v996 = vpack.c.b16 %v980, %v980
      %v997 = vpack.c.b16 %v981, %v981
      %v998 = vpack.c.b16 %v982, %v982
      %v999 = vpack.c.b16 %v983, %v983
      %v1000 = vpack.c.b16 %v984, %v984
      %v1001 = vpack.c.b16 %v985, %v985
      %v1002 = vpack.c.b16 %v986, %v986
      %v1003 = vpack.c.b16 %v987, %v987
      %v1004 = vpack.c.b16 %v988, %v988
      %v1005 = vpack.c.b16 %v989, %v989
      %v1006 = vpack.c.b16 %v990, %v990
      %v1007 = vpack.c.b16 %v991, %v991
      %v1008 = vpack.c.b16 %v992, %v992
      %v1009 = vpack.c.b16 %v993, %v993
      %v1010 = vpack.c.b16 %v994, %v994
      %v1011 = vpack.c.b16 %v995, %v995
      %vm1028 = vcmask 125952
      %1029 = vst.msk [vmem:[%s240] sm:$0xf] %vm1028, %v996
      %1030 = vst.msk [vmem:[%s240 + $0x4] sm:$0xf] %vm1028, %v997
      %1031 = vst.msk [vmem:[%s240 + $0x8] sm:$0xf] %vm1028, %v998
      %1032 = vst.msk [vmem:[%s240 + $0xc] sm:$0xf] %vm1028, %v999
      %1033 = vst.msk [vmem:[%s240 + $0x10] sm:$0xf] %vm1028, %v1000
      %1034 = vst.msk [vmem:[%s240 + $0x14] sm:$0xf] %vm1028, %v1001
      %1035 = vst.msk [vmem:[%s240 + $0x18] sm:$0xf] %vm1028, %v1002
      %1036 = vst.msk [vmem:[%s240 + $0x1c] sm:$0xf] %vm1028, %v1003
      %1037 = vst.msk [vmem:[%s240 + $0x20] sm:$0xf] %vm1028, %v1004
      %1038 = vst.msk [vmem:[%s240 + $0x24] sm:$0xf] %vm1028, %v1005
      %1039 = vst.msk [vmem:[%s240 + $0x28] sm:$0xf] %vm1028, %v1006
      %1040 = vst.msk [vmem:[%s240 + $0x2c] sm:$0xf] %vm1028, %v1007
      %1041 = vst.msk [vmem:[%s240 + $0x30] sm:$0xf] %vm1028, %v1008
      %1042 = vst.msk [vmem:[%s240 + $0x34] sm:$0xf] %vm1028, %v1009
      %1043 = vst.msk [vmem:[%s240 + $0x38] sm:$0xf] %vm1028, %v1010
      %1044 = vst.msk [vmem:[%s240 + $0x3c] sm:$0xf] %vm1028, %v1011
      %s1045 = smul.u32 8, %s20
      %p1046 = scmp.lt.s32.totalorder %s19, 1
      %s1047 = scalar_select %p1046, %s19, 1
      %p1048 = scmp.lt.s32.totalorder %s1045, 15
      %s1049 = scalar_select %p1048, %s1045, 15
      %p1050 = scmp.lt.s32.totalorder %s21, 0
      %s1051 = scalar_select %p1050, %s21, 0
      %s1052 = smul.addr %s1049, 2
      %s1053 = sadd.s32 %s1051, %s1052
      %s1054 = smul.addr %s1047, 32
      %s1055 = sadd.s32 %s1053, %s1054
      %s1056 = smul.addr %s1055, 4
      %s1057 = scalar_lea.vmem %s3, %s1056
      // Predicated region
      $region33: #{bottleneck_fwd.4} parent=31 // pred_check
        %p1058 = pneg %p133
      $region34: #{bottleneck_fwd.4} parent=31 // pred_check_branch
        %1060 = sbr.rel (%p1058) target = $region36
      $region35: #{bottleneck_fwd.4} parent=31 // pred_region
        %s1061 = smul.u32 8, %s20
      $region36: #{bottleneck_fwd.4} parent=31 // pred_fallthru
        _
    $region32: #{bottleneck_fwd.4} parent=5 // pred_fallthru
      _
    %p1062 = scmp.le.s32.totalorder 2, %s9
    // Predicated region
    $region37: #{bottleneck_fwd.4} parent=5 // pred_check
      %p1063 = pneg %p1062
    $region38: #{bottleneck_fwd.4} parent=5 // pred_check_branch
      %1065 = sbr.rel (%p1063) target = $region40
    $region39: #{bottleneck_fwd.4} parent=5 // pred_region
      %s1066 = ssub.s32 %s9, 2
      // Predicated region
      $region41: #{bottleneck_fwd.4} parent=39 // pred_check
        %p1067 = pneg %p139
      $region42: #{bottleneck_fwd.4} parent=39 // pred_check_branch
        %1069 = sbr.rel (%p1067) target = $region44
      $region43: #{bottleneck_fwd.4} parent=39 // pred_region
        %s1070 = smul.u32 8, %s23
        %p1071 = scmp.lt.s32.totalorder %s22, 1
        %s1072 = scalar_select %p1071, %s22, 1
        %p1073 = scmp.lt.s32.totalorder %s1070, 15
        %s1074 = scalar_select %p1073, %s1070, 15
        %p1075 = scmp.lt.s32.totalorder %s24, 0
        %s1076 = scalar_select %p1075, %s24, 0
        %s1077 = smul.addr %s1074, 2
        %s1078 = sadd.s32 %s1076, %s1077
        %s1079 = smul.addr %s1072, 32
        %s1080 = sadd.s32 %s1078, %s1079
        %s1081 = smul.addr %s1080, 4
        %s1082 = scalar_lea.vmem %s3, %s1081
      $region44: #{bottleneck_fwd.4} parent=39 // pred_fallthru
        _
    $region40: #{bottleneck_fwd.4} parent=5 // pred_fallthru
      _
  $region6: #{bottleneck_fwd.4} parent=0 // loop_footer
    %s13 = sadd.s32 1, %s9
  $region7: #{bottleneck_fwd.4} parent=0 // loop_footer_branch
    %8 = sbr.rel target = $region3
  $region8: #{bottleneck_fwd.4} parent=0 // loop_exit
    _

</llo_original>
